<compile_context>
chip_gen: v7x
topology: tpu7x:2x2x1
jax: 0.10.0
libtpu: 0.0.40
codegen_flags: <defaults>
</compile_context>

<pallas_src>
import numpy as np

import jax
import jax.numpy as jnp
from jax.experimental import pallas as pl
from jax.experimental.pallas import tpu as pltpu


def _round_up(x, m):
  return (x + m - 1) // m * m


# ----------------------------- kernel ----------------------------------------


def point_conv_kernel(rel_ref, basis_ref,
                      w1r_ref, w1s_ref, w1c_ref, b1_ref,
                      w2_ref, b2_ref,
                      g1_ref, gb1_ref, g2_ref, gb2_ref,
                      o_ref):
  """One destination-node tile: Fourier embed -> local MLP -> k-max -> global MLP."""
  tm, k, dp = rel_ref.shape
  # (tile_m, k, dp) -> (tile_m*k, dp); bf16 operands, f32 MXU accumulation.
  rel = rel_ref[...].reshape(tm * k, dp).astype(jnp.bfloat16)

  # Fourier positional embedding; sin/cos evaluated in f32.
  emb = jnp.dot(rel, basis_ref[...], preferred_element_type=jnp.float32)
  sin_e = jnp.sin(emb).astype(jnp.bfloat16)
  cos_e = jnp.cos(emb).astype(jnp.bfloat16)

  # local_nn layer 1: cat([rel, sin, cos], dim=1) @ W1^T is folded into three
  # partial matmuls against row-blocks of W1 (avoids a lane-axis concat).
  h = jnp.dot(rel, w1r_ref[...], preferred_element_type=jnp.float32)
  h = h + jnp.dot(sin_e, w1s_ref[...], preferred_element_type=jnp.float32)
  h = h + jnp.dot(cos_e, w1c_ref[...], preferred_element_type=jnp.float32)
  h = h + b1_ref[...]
  h = jnp.maximum(h, 0.0)                                          # ReLU
  # local_nn layer 2.
  h = jnp.dot(h.astype(jnp.bfloat16), w2_ref[...],
              preferred_element_type=jnp.float32) + b2_ref[...]

  # scatter_max over destinations == max over each destination's k neighbours
  # (edges arrive grouped (tile_m, k) per destination; see wrapper).
  h = h.reshape(tm, k, h.shape[-1])
  red = h[:, 0, :]
  for kk in range(1, k):
    red = jnp.maximum(red, h[:, kk, :])

  # global_nn: Lin -> ReLU -> Lin.
  g = jnp.dot(red.astype(jnp.bfloat16), g1_ref[...],
              preferred_element_type=jnp.float32) + gb1_ref[...]
  g = jnp.maximum(g, 0.0)
  g = jnp.dot(g.astype(jnp.bfloat16), g2_ref[...],
              preferred_element_type=jnp.float32) + gb2_ref[...]

  o_ref[...] = g.astype(o_ref.dtype)


# ----------------------------- wrapper ----------------------------------------


def prepare_point_conv_params(raw, d_pos, d_emb):
  """One-time prep: transpose to (in, out), split W1 rows, cast matmul weights to bf16."""
  dp = _round_up(d_pos, 8)
  bf = jnp.bfloat16
  w1t = raw["local_w1"].T                                   # (d_pos + 2*d_emb, H1)
  w1_rel = jnp.pad(w1t[:d_pos], ((0, dp - d_pos), (0, 0)))  # pad contraction dim to 8
  return dict(
      w1_rel=w1_rel.astype(bf),
      w1_sin=w1t[d_pos:d_pos + d_emb].astype(bf),
      w1_cos=w1t[d_pos + d_emb:].astype(bf),
      b1=raw["local_b1"].reshape(1, -1).astype(jnp.float32),
      w2=raw["local_w2"].T.astype(bf),
      b2=raw["local_b2"].reshape(1, -1).astype(jnp.float32),
      g1=raw["global_w1"].T.astype(bf),
      gb1=raw["global_b1"].reshape(1, -1).astype(jnp.float32),
      g2=raw["global_w2"].T.astype(bf),
      gb2=raw["global_b2"].reshape(1, -1).astype(jnp.float32),
  )


def _full_spec(a):
  return pl.BlockSpec(a.shape, lambda i, _n=a.ndim: (0,) * _n)


def point_conv_forward(pos, pos_dst, edge_index, basis, prep, *, k, tile_m=8):
  row, col = edge_index[0], edge_index[1]
  e = int(row.shape[0])
  m = int(jnp.max(col)) + 1                       # dim_size = col.max().item() + 1
  assert e == m * k, "expected a fixed number of k edges per destination node"
  # Kernel assumption: edges grouped by destination (layout produced by knn in 3DILG).
  assert np.array_equal(np.asarray(col), np.repeat(np.arange(m), k)), (
      "edge_index must be grouped by destination: col == repeat(arange(M), k)")

  d = pos.shape[1]
  dp = _round_up(d, 8)
  f_out = prep["g2"].shape[1]

  # Data-dependent gather + relative positions (tiny, O(E*3)) done wrapper-side.
  rel = jnp.take(pos, row, axis=0) - jnp.take(pos_dst, col, axis=0)   # (E, d) f32
  rel = jnp.pad(rel, ((0, 0), (0, dp - d))).reshape(m, k, dp)
  mp = _round_up(m, tile_m)
  if mp != m:
    rel = jnp.pad(rel, ((0, mp - m), (0, 0), (0, 0)))

  basis_p = jnp.pad(basis, ((0, dp - d), (0, 0))).astype(jnp.bfloat16)

  weights = (basis_p, prep["w1_rel"], prep["w1_sin"], prep["w1_cos"], prep["b1"],
             prep["w2"], prep["b2"], prep["g1"], prep["gb1"], prep["g2"], prep["gb2"])

  out = pl.pallas_call(
      point_conv_kernel,
      out_shape=jax.ShapeDtypeStruct((mp, f_out), jnp.float32),
      grid=(mp // tile_m,),
      in_specs=[pl.BlockSpec((tile_m, k, dp), lambda i: (i, 0, 0))]
               + [_full_spec(w) for w in weights],
      out_specs=pl.BlockSpec((tile_m, f_out), lambda i: (i, 0)),
      compiler_params=pltpu.CompilerParams(dimension_semantics=("parallel",)),
  )(rel, *weights)
  return out[:m]


# --------------------------- pure-JAX references -------------------------------


def ref_point_conv_f32(pos, pos_dst, edge_index, basis, raw):
  """Exact PyTorch-module semantics in f32."""
  row, col = edge_index[0], edge_index[1]
  out = pos[row] - pos_dst[col]
  emb = jnp.einsum("bd,de->be", out, basis)
  emb = jnp.concatenate([jnp.sin(emb), jnp.cos(emb)], axis=1)
  out = jnp.concatenate([out, emb], axis=1)
  out = jnp.maximum(out @ raw["local_w1"].T + raw["local_b1"], 0.0)     # local_nn
  out = out @ raw["local_w2"].T + raw["local_b2"]
  m = int(col.max()) + 1                                                # scatter_max
  red = jnp.full((m, out.shape[1]), -jnp.inf, out.dtype).at[col].max(out)
  red = jnp.maximum(red @ raw["global_w1"].T + raw["global_b1"], 0.0)   # global_nn
  return red @ raw["global_w2"].T + raw["global_b2"]


def ref_point_conv_bf16(pos, pos_dst, edge_index, basis, prep):
  """Reference mirroring the kernel's bf16-input / f32-accumulate numerics."""
  row, col = edge_index[0], edge_index[1]
  d = pos.shape[1]
  dp = prep["w1_rel"].shape[0]
  rel = jnp.pad(pos[row] - pos_dst[col], ((0, 0), (0, dp - d))).astype(jnp.bfloat16)
  basis_p = jnp.pad(basis, ((0, dp - d), (0, 0))).astype(jnp.bfloat16)
  emb = jnp.dot(rel, basis_p, preferred_element_type=jnp.float32)
  sin_e = jnp.sin(emb).astype(jnp.bfloat16)
  cos_e = jnp.cos(emb).astype(jnp.bfloat16)
  h = jnp.dot(rel, prep["w1_rel"], preferred_element_type=jnp.float32)
  h = h + jnp.dot(sin_e, prep["w1_sin"], preferred_element_type=jnp.float32)
  h = h + jnp.dot(cos_e, prep["w1_cos"], preferred_element_type=jnp.float32)
  h = h + prep["b1"]
  h = jnp.maximum(h, 0.0)
  h = jnp.dot(h.astype(jnp.bfloat16), prep["w2"],
              preferred_element_type=jnp.float32) + prep["b2"]
  m = int(col.max()) + 1
  red = jnp.full((m, h.shape[1]), -jnp.inf, h.dtype).at[col].max(h)
  g = jnp.dot(red.astype(jnp.bfloat16), prep["g1"],
              preferred_element_type=jnp.float32) + prep["gb1"]
  g = jnp.maximum(g, 0.0)
  return jnp.dot(g.astype(jnp.bfloat16), prep["g2"],
                 preferred_element_type=jnp.float32) + prep["gb2"]


# ------------------------------- main ------------------------------------------


if __name__ == "__main__":
  D, DE = 3, 16                  # coordinate dim, basis embedding dim
  H1 = H2 = H3 = 32              # local_nn / global_nn widths
  F = 32                         # output dim
  N_SRC, M, K = 64, 16, 8        # source points, destination nodes, k neighbours
  TILE_M = 8

  key = jax.random.PRNGKey(0)
  keys = jax.random.split(key, 8)
  pos = jax.random.uniform(keys[0], (N_SRC, D), jnp.float32)
  pos_dst = jax.random.uniform(keys[1], (M, D), jnp.float32)
  basis = jax.random.normal(keys[2], (D, DE), jnp.float32) * 2.0

  # Deterministic kNN-style edge list: K source neighbours per destination node,
  # grouped by destination (the layout torch_cluster.knn produces in 3DILG).
  row = jax.random.randint(keys[3], (M * K,), 0, N_SRC, dtype=jnp.int32)
  col = jnp.repeat(jnp.arange(M, dtype=jnp.int32), K)
  edge_index = jnp.stack([row, col], axis=0)

  def lin_init(k_, fan_out, fan_in):
    kw, kb = jax.random.split(k_)
    bound = fan_in ** -0.5
    w = jax.random.uniform(kw, (fan_out, fan_in), jnp.float32, -bound, bound)
    b = jax.random.uniform(kb, (fan_out,), jnp.float32, -bound, bound)
    return w, b

  raw = {}
  raw["local_w1"], raw["local_b1"] = lin_init(keys[4], H1, D + 2 * DE)
  raw["local_w2"], raw["local_b2"] = lin_init(keys[5], H2, H1)
  raw["global_w1"], raw["global_b1"] = lin_init(keys[6], H3, H2)
  raw["global_w2"], raw["global_b2"] = lin_init(keys[7], F, H3)

  prep = prepare_point_conv_params(raw, D, DE)

  out = point_conv_forward(pos, pos_dst, edge_index, basis, prep, k=K, tile_m=TILE_M)
  out = jax.block_until_ready(out)
  assert out.shape == (M, F), out.shape

  # Structural check: tight tolerance vs a reference with identical bf16 numerics.
  ref_b = ref_point_conv_bf16(pos, pos_dst, edge_index, basis, prep)
  assert jnp.allclose(out, ref_b, atol=2e-3, rtol=2e-3), "mismatch vs bf16-mirrored reference"

  # Module-semantics check: loose tolerance vs the exact f32 PyTorch semantics
  # (difference is only the intentional bf16 MXU quantization).
  ref_e = ref_point_conv_f32(pos, pos_dst, edge_index, basis, raw)
  assert jnp.allclose(out, ref_e, atol=5e-2, rtol=5e-2), "mismatch vs f32 module reference"

  print("KERNEL_OK")
</pallas_src>

<mosaic_0001>
module attributes {stable_mosaic.version = 11 : i64} {
  func.func @point_conv_kernel(%arg0: i32, %arg1: memref<8x8x8xf32, #tpu.memory_space<vmem>>, %arg2: memref<8x16xbf16, #tpu.memory_space<vmem>>, %arg3: memref<8x32xbf16, #tpu.memory_space<vmem>>, %arg4: memref<16x32xbf16, #tpu.memory_space<vmem>>, %arg5: memref<16x32xbf16, #tpu.memory_space<vmem>>, %arg6: memref<1x32xf32, #tpu.memory_space<vmem>>, %arg7: memref<32x32xbf16, #tpu.memory_space<vmem>>, %arg8: memref<1x32xf32, #tpu.memory_space<vmem>>, %arg9: memref<32x32xbf16, #tpu.memory_space<vmem>>, %arg10: memref<1x32xf32, #tpu.memory_space<vmem>>, %arg11: memref<32x32xbf16, #tpu.memory_space<vmem>>, %arg12: memref<1x32xf32, #tpu.memory_space<vmem>>, %arg13: memref<8x32xf32, #tpu.memory_space<vmem>>) attributes {dimension_semantics = [#tpu.dimension_semantics<parallel>], iteration_bounds = array<i64: 2>, scalar_prefetch = 0 : i64, scratch_operands = 0 : i64, tpu.core_type = #tpu.core_type<tc>, window_params = [{transform_indices = @transform_0, window_bounds = array<i64: 8, 8, 8>}, {pipeline_mode = #tpu.pipeline_mode<synchronous>, transform_indices = @transform_1, window_bounds = array<i64: 8, 16>}, {pipeline_mode = #tpu.pipeline_mode<synchronous>, transform_indices = @transform_2, window_bounds = array<i64: 8, 32>}, {pipeline_mode = #tpu.pipeline_mode<synchronous>, transform_indices = @transform_3, window_bounds = array<i64: 16, 32>}, {pipeline_mode = #tpu.pipeline_mode<synchronous>, transform_indices = @transform_4, window_bounds = array<i64: 16, 32>}, {pipeline_mode = #tpu.pipeline_mode<synchronous>, transform_indices = @transform_5, window_bounds = array<i64: 1, 32>}, {pipeline_mode = #tpu.pipeline_mode<synchronous>, transform_indices = @transform_6, window_bounds = array<i64: 32, 32>}, {pipeline_mode = #tpu.pipeline_mode<synchronous>, transform_indices = @transform_7, window_bounds = array<i64: 1, 32>}, {pipeline_mode = #tpu.pipeline_mode<synchronous>, transform_indices = @transform_8, window_bounds = array<i64: 32, 32>}, {pipeline_mode = #tpu.pipeline_mode<synchronous>, transform_indices = @transform_9, window_bounds = array<i64: 1, 32>}, {pipeline_mode = #tpu.pipeline_mode<synchronous>, transform_indices = @transform_10, window_bounds = array<i64: 32, 32>}, {pipeline_mode = #tpu.pipeline_mode<synchronous>, transform_indices = @transform_11, window_bounds = array<i64: 1, 32>}, {transform_indices = @transform_12, window_bounds = array<i64: 8, 32>}]} {
    %c0 = arith.constant 0 : index
    %c0_0 = arith.constant 0 : index
    %c0_1 = arith.constant 0 : index
    %0 = vector.load %arg1[%c0, %c0_0, %c0_1] : memref<8x8x8xf32, #tpu.memory_space<vmem>>, vector<8x8x8xf32>
    %1 = vector.shape_cast %0 : vector<8x8x8xf32> to vector<64x8xf32>
    %2 = arith.truncf %1 : vector<64x8xf32> to vector<64x8xbf16>
    %c0_2 = arith.constant 0 : index
    %c0_3 = arith.constant 0 : index
    %3 = vector.load %arg2[%c0_2, %c0_3] : memref<8x16xbf16, #tpu.memory_space<vmem>>, vector<8x16xbf16>
    %cst = arith.constant dense<0.000000e+00> : vector<64x16xf32>
    %4 = tpu.matmul %2, %3, %cst {dimension_numbers = #tpu.dot_dimension_numbers<[1], [0], [0], [1], [0, 0, 1, 1], [], []>} : vector<64x8xbf16>, vector<8x16xbf16>, vector<64x16xf32> -> vector<64x16xf32>
    %5 = math.sin %4 : vector<64x16xf32>
    %6 = arith.truncf %5 : vector<64x16xf32> to vector<64x16xbf16>
    %7 = math.cos %4 : vector<64x16xf32>
    %8 = arith.truncf %7 : vector<64x16xf32> to vector<64x16xbf16>
    %c0_4 = arith.constant 0 : index
    %c0_5 = arith.constant 0 : index
    %9 = vector.load %arg3[%c0_4, %c0_5] : memref<8x32xbf16, #tpu.memory_space<vmem>>, vector<8x32xbf16>
    %cst_6 = arith.constant dense<0.000000e+00> : vector<64x32xf32>
    %10 = tpu.matmul %2, %9, %cst_6 {dimension_numbers = #tpu.dot_dimension_numbers<[1], [0], [0], [1], [0, 0, 1, 1], [], []>} : vector<64x8xbf16>, vector<8x32xbf16>, vector<64x32xf32> -> vector<64x32xf32>
    %c0_7 = arith.constant 0 : index
    %c0_8 = arith.constant 0 : index
    %11 = vector.load %arg4[%c0_7, %c0_8] : memref<16x32xbf16, #tpu.memory_space<vmem>>, vector<16x32xbf16>
    %cst_9 = arith.constant dense<0.000000e+00> : vector<64x32xf32>
    %12 = tpu.matmul %6, %11, %cst_9 {dimension_numbers = #tpu.dot_dimension_numbers<[1], [0], [0], [1], [0, 0, 1, 1], [], []>} : vector<64x16xbf16>, vector<16x32xbf16>, vector<64x32xf32> -> vector<64x32xf32>
    %13 = arith.addf %10, %12 : vector<64x32xf32>
    %c0_10 = arith.constant 0 : index
    %c0_11 = arith.constant 0 : index
    %14 = vector.load %arg5[%c0_10, %c0_11] : memref<16x32xbf16, #tpu.memory_space<vmem>>, vector<16x32xbf16>
    %cst_12 = arith.constant dense<0.000000e+00> : vector<64x32xf32>
    %15 = tpu.matmul %8, %14, %cst_12 {dimension_numbers = #tpu.dot_dimension_numbers<[1], [0], [0], [1], [0, 0, 1, 1], [], []>} : vector<64x16xbf16>, vector<16x32xbf16>, vector<64x32xf32> -> vector<64x32xf32>
    %16 = arith.addf %13, %15 : vector<64x32xf32>
    %c0_13 = arith.constant 0 : index
    %c0_14 = arith.constant 0 : index
    %17 = vector.load %arg6[%c0_13, %c0_14] : memref<1x32xf32, #tpu.memory_space<vmem>>, vector<1x32xf32>
    %18 = vector.broadcast %17 : vector<1x32xf32> to vector<64x32xf32>
    %19 = arith.addf %16, %18 : vector<64x32xf32>
    %cst_15 = arith.constant 0.000000e+00 : f32
    %20 = vector.broadcast %cst_15 : f32 to vector<64x32xf32>
    %21 = arith.maximumf %19, %20 : vector<64x32xf32>
    %22 = arith.truncf %21 : vector<64x32xf32> to vector<64x32xbf16>
    %c0_16 = arith.constant 0 : index
    %c0_17 = arith.constant 0 : index
    %23 = vector.load %arg7[%c0_16, %c0_17] : memref<32x32xbf16, #tpu.memory_space<vmem>>, vector<32x32xbf16>
    %cst_18 = arith.constant dense<0.000000e+00> : vector<64x32xf32>
    %24 = tpu.matmul %22, %23, %cst_18 {dimension_numbers = #tpu.dot_dimension_numbers<[1], [0], [0], [1], [0, 0, 1, 1], [], []>} : vector<64x32xbf16>, vector<32x32xbf16>, vector<64x32xf32> -> vector<64x32xf32>
    %c0_19 = arith.constant 0 : index
    %c0_20 = arith.constant 0 : index
    %25 = vector.load %arg8[%c0_19, %c0_20] : memref<1x32xf32, #tpu.memory_space<vmem>>, vector<1x32xf32>
    %26 = vector.broadcast %25 : vector<1x32xf32> to vector<64x32xf32>
    %27 = arith.addf %24, %26 : vector<64x32xf32>
    %28 = vector.shape_cast %27 : vector<64x32xf32> to vector<8x8x32xf32>
    %29 = vector.extract_strided_slice %28 {offsets = [0, 0, 0], sizes = [8, 1, 32], strides = [1, 1, 1]} : vector<8x8x32xf32> to vector<8x1x32xf32>
    %30 = vector.shape_cast %29 : vector<8x1x32xf32> to vector<8x32xf32>
    %31 = vector.extract_strided_slice %28 {offsets = [0, 1, 0], sizes = [8, 1, 32], strides = [1, 1, 1]} : vector<8x8x32xf32> to vector<8x1x32xf32>
    %32 = vector.shape_cast %31 : vector<8x1x32xf32> to vector<8x32xf32>
    %33 = arith.maximumf %30, %32 : vector<8x32xf32>
    %34 = vector.extract_strided_slice %28 {offsets = [0, 2, 0], sizes = [8, 1, 32], strides = [1, 1, 1]} : vector<8x8x32xf32> to vector<8x1x32xf32>
    %35 = vector.shape_cast %34 : vector<8x1x32xf32> to vector<8x32xf32>
    %36 = arith.maximumf %33, %35 : vector<8x32xf32>
    %37 = vector.extract_strided_slice %28 {offsets = [0, 3, 0], sizes = [8, 1, 32], strides = [1, 1, 1]} : vector<8x8x32xf32> to vector<8x1x32xf32>
    %38 = vector.shape_cast %37 : vector<8x1x32xf32> to vector<8x32xf32>
    %39 = arith.maximumf %36, %38 : vector<8x32xf32>
    %40 = vector.extract_strided_slice %28 {offsets = [0, 4, 0], sizes = [8, 1, 32], strides = [1, 1, 1]} : vector<8x8x32xf32> to vector<8x1x32xf32>
    %41 = vector.shape_cast %40 : vector<8x1x32xf32> to vector<8x32xf32>
    %42 = arith.maximumf %39, %41 : vector<8x32xf32>
    %43 = vector.extract_strided_slice %28 {offsets = [0, 5, 0], sizes = [8, 1, 32], strides = [1, 1, 1]} : vector<8x8x32xf32> to vector<8x1x32xf32>
    %44 = vector.shape_cast %43 : vector<8x1x32xf32> to vector<8x32xf32>
    %45 = arith.maximumf %42, %44 : vector<8x32xf32>
    %46 = vector.extract_strided_slice %28 {offsets = [0, 6, 0], sizes = [8, 1, 32], strides = [1, 1, 1]} : vector<8x8x32xf32> to vector<8x1x32xf32>
    %47 = vector.shape_cast %46 : vector<8x1x32xf32> to vector<8x32xf32>
    %48 = arith.maximumf %45, %47 : vector<8x32xf32>
    %49 = vector.extract_strided_slice %28 {offsets = [0, 7, 0], sizes = [8, 1, 32], strides = [1, 1, 1]} : vector<8x8x32xf32> to vector<8x1x32xf32>
    %50 = vector.shape_cast %49 : vector<8x1x32xf32> to vector<8x32xf32>
    %51 = arith.maximumf %48, %50 : vector<8x32xf32>
    %52 = arith.truncf %51 : vector<8x32xf32> to vector<8x32xbf16>
    %c0_21 = arith.constant 0 : index
    %c0_22 = arith.constant 0 : index
    %53 = vector.load %arg9[%c0_21, %c0_22] : memref<32x32xbf16, #tpu.memory_space<vmem>>, vector<32x32xbf16>
    %cst_23 = arith.constant dense<0.000000e+00> : vector<8x32xf32>
    %54 = tpu.matmul %52, %53, %cst_23 {dimension_numbers = #tpu.dot_dimension_numbers<[1], [0], [0], [1], [0, 0, 1, 1], [], []>} : vector<8x32xbf16>, vector<32x32xbf16>, vector<8x32xf32> -> vector<8x32xf32>
    %c0_24 = arith.constant 0 : index
    %c0_25 = arith.constant 0 : index
    %55 = vector.load %arg10[%c0_24, %c0_25] : memref<1x32xf32, #tpu.memory_space<vmem>>, vector<1x32xf32>
    %56 = vector.broadcast %55 : vector<1x32xf32> to vector<8x32xf32>
    %57 = arith.addf %54, %56 : vector<8x32xf32>
    %cst_26 = arith.constant 0.000000e+00 : f32
    %58 = vector.broadcast %cst_26 : f32 to vector<8x32xf32>
    %59 = arith.maximumf %57, %58 : vector<8x32xf32>
    %60 = arith.truncf %59 : vector<8x32xf32> to vector<8x32xbf16>
    %c0_27 = arith.constant 0 : index
    %c0_28 = arith.constant 0 : index
    %61 = vector.load %arg11[%c0_27, %c0_28] : memref<32x32xbf16, #tpu.memory_space<vmem>>, vector<32x32xbf16>
    %cst_29 = arith.constant dense<0.000000e+00> : vector<8x32xf32>
    %62 = tpu.matmul %60, %61, %cst_29 {dimension_numbers = #tpu.dot_dimension_numbers<[1], [0], [0], [1], [0, 0, 1, 1], [], []>} : vector<8x32xbf16>, vector<32x32xbf16>, vector<8x32xf32> -> vector<8x32xf32>
    %c0_30 = arith.constant 0 : index
    %c0_31 = arith.constant 0 : index
    %63 = vector.load %arg12[%c0_30, %c0_31] : memref<1x32xf32, #tpu.memory_space<vmem>>, vector<1x32xf32>
    %64 = vector.broadcast %63 : vector<1x32xf32> to vector<8x32xf32>
    %65 = arith.addf %62, %64 : vector<8x32xf32>
    %c0_32 = arith.constant 0 : index
    %c0_33 = arith.constant 0 : index
    %66 = vector.load %arg13[%c0_32, %c0_33] : memref<8x32xf32, #tpu.memory_space<vmem>>, vector<8x32xf32>
    tpu.vector_store %arg13[%c0_32, %c0_33], %65 {strides = array<i32>} : memref<8x32xf32, #tpu.memory_space<vmem>>, vector<8x32xf32>,
    return
  }
  func.func @transform_0(%arg0: i32) -> (i32, i32, i32) {
    %c0_i32 = arith.constant 0 : i32
    %c0_i32_0 = arith.constant 0 : i32
    %c0_i32_1 = arith.constant 0 : i32
    return %arg0, %c0_i32, %c0_i32_0 : i32, i32, i32
  }
  func.func @transform_1(%arg0: i32) -> (i32, i32) {
    %c0_i32 = arith.constant 0 : i32
    %c0_i32_0 = arith.constant 0 : i32
    %c0_i32_1 = arith.constant 0 : i32
    return %c0_i32, %c0_i32_0 : i32, i32
  }
  func.func @transform_2(%arg0: i32) -> (i32, i32) {
    %c0_i32 = arith.constant 0 : i32
    %c0_i32_0 = arith.constant 0 : i32
    %c0_i32_1 = arith.constant 0 : i32
    return %c0_i32, %c0_i32_0 : i32, i32
  }
  func.func @transform_3(%arg0: i32) -> (i32, i32) {
    %c0_i32 = arith.constant 0 : i32
    %c0_i32_0 = arith.constant 0 : i32
    %c0_i32_1 = arith.constant 0 : i32
    return %c0_i32, %c0_i32_0 : i32, i32
  }
  func.func @transform_4(%arg0: i32) -> (i32, i32) {
    %c0_i32 = arith.constant 0 : i32
    %c0_i32_0 = arith.constant 0 : i32
    %c0_i32_1 = arith.constant 0 : i32
    return %c0_i32, %c0_i32_0 : i32, i32
  }
  func.func @transform_5(%arg0: i32) -> (i32, i32) {
    %c0_i32 = arith.constant 0 : i32
    %c0_i32_0 = arith.constant 0 : i32
    %c0_i32_1 = arith.constant 0 : i32
    return %c0_i32, %c0_i32_0 : i32, i32
  }
  func.func @transform_6(%arg0: i32) -> (i32, i32) {
    %c0_i32 = arith.constant 0 : i32
    %c0_i32_0 = arith.constant 0 : i32
    %c0_i32_1 = arith.constant 0 : i32
    return %c0_i32, %c0_i32_0 : i32, i32
  }
  func.func @transform_7(%arg0: i32) -> (i32, i32) {
    %c0_i32 = arith.constant 0 : i32
    %c0_i32_0 = arith.constant 0 : i32
    %c0_i32_1 = arith.constant 0 : i32
    return %c0_i32, %c0_i32_0 : i32, i32
  }
  func.func @transform_8(%arg0: i32) -> (i32, i32) {
    %c0_i32 = arith.constant 0 : i32
    %c0_i32_0 = arith.constant 0 : i32
    %c0_i32_1 = arith.constant 0 : i32
    return %c0_i32, %c0_i32_0 : i32, i32
  }
  func.func @transform_9(%arg0: i32) -> (i32, i32) {
    %c0_i32 = arith.constant 0 : i32
    %c0_i32_0 = arith.constant 0 : i32
    %c0_i32_1 = arith.constant 0 : i32
    return %c0_i32, %c0_i32_0 : i32, i32
  }
  func.func @transform_10(%arg0: i32) -> (i32, i32) {
    %c0_i32 = arith.constant 0 : i32
    %c0_i32_0 = arith.constant 0 : i32
    %c0_i32_1 = arith.constant 0 : i32
    return %c0_i32, %c0_i32_0 : i32, i32
  }
  func.func @transform_11(%arg0: i32) -> (i32, i32) {
    %c0_i32 = arith.constant 0 : i32
    %c0_i32_0 = arith.constant 0 : i32
    %c0_i32_1 = arith.constant 0 : i32
    return %c0_i32, %c0_i32_0 : i32, i32
  }
  func.func @transform_12(%arg0: i32) -> (i32, i32) {
    %c0_i32 = arith.constant 0 : i32
    %c0_i32_0 = arith.constant 0 : i32
    return %arg0, %c0_i32 : i32, i32
  }
}

</mosaic_0001>

<llo_original>
// kernel: tpu_custom_call.1
$region0: #{tpu_custom_call.1}
  #allocation0 [shape = 'u32[]', space=smem, size = 0x4, offset = 0x4, fixed_abs, tag = 'smem constant byte address 0x4 - core index']
  #allocation1 [shape = 'u32[144,128]{1,0:T(1,128)}', space=vmem, size = 0x12000, scoped, tag = 'internal scratch']
  %s0 = inlined_call_operand.vmem [shape: f32[16,8,8], index: 0, kind: input, shape index: {}]
  %s1 = inlined_call_operand.vmem [shape: bf16[8,16], index: 1, kind: input, shape index: {}]
  %s2 = inlined_call_operand.vmem [shape: bf16[8,32], index: 2, kind: input, shape index: {}]
  %s3 = inlined_call_operand.vmem [shape: bf16[16,32], index: 3, kind: input, shape index: {}]
  %s4 = inlined_call_operand.vmem [shape: bf16[16,32], index: 4, kind: input, shape index: {}]
  %s5 = inlined_call_operand.vmem [shape: f32[1,32], index: 5, kind: input, shape index: {}]
  %s6 = inlined_call_operand.vmem [shape: bf16[32,32], index: 6, kind: input, shape index: {}]
  %s7 = inlined_call_operand.vmem [shape: f32[1,32], index: 7, kind: input, shape index: {}]
  %s8 = inlined_call_operand.vmem [shape: bf16[32,32], index: 8, kind: input, shape index: {}]
  %s9 = inlined_call_operand.vmem [shape: f32[1,32], index: 9, kind: input, shape index: {}]
  %s10 = inlined_call_operand.vmem [shape: bf16[32,32], index: 10, kind: input, shape index: {}]
  %s11 = inlined_call_operand.vmem [shape: f32[1,32], index: 11, kind: input, shape index: {}]
  %s12 = inlined_call_operand.hbm [shape: f32[16,32], index: 12, kind: output, shape index: {}]
  %s13 = sld [smem:[#allocation0]]
  $region81: #{tpu_custom_call.1} parent=0
    _
  %s15 = ssub.s32 1, %s13
  %s16 = scalar_select 0, %s15, %s13
  $region1: #{tpu_custom_call.1} parent=0
    #allocation2 [shape = 'u8[8192]{0}', space=vmem, size = 0x2000, scoped, tag = 'output window, operand 0']
    #allocation3 [shape = 's32[2]{0}', space=sflag, size = 0x8, scoped, tag = 'scoped memory for tpu_custom_call.1']
    %17 = vsyncpa [#allocation3], 0
    %s18 = scalar_lea.sflag [#allocation3], 1
    %19 = vsyncpa %s18, 0
    loop: start=0, step=1, limit=4
    $region2: #{tpu_custom_call.1} parent=1 // loop_pre_header
      _
    $region3: #{tpu_custom_call.1} parent=1 // loop_header
      %s21 = sphi 0, %s25
      %p22 = scmp.ge.s32.totalorder %s21, 4
      %s31 = sphi 0, %s33
      %s34 = sphi 0, %s31
      %s35 = sphi 0, %s34
      %s51 = sphi 0, %s35
      %s55 = sphi 0, %s55
      %s57 = sphi 0, %s55
      %s58 = sphi 0, %s57
      %s72 = sphi 0, %s58
      %s76 = sphi 0, %s76
      %s78 = sphi 0, %s76
      %s79 = sphi 0, %s78
      %s93 = sphi 0, %s79
      %s97 = sphi 0, %s97
      %s99 = sphi 0, %s97
      %s100 = sphi 0, %s99
      %s114 = sphi 0, %s100
      %s118 = sphi 0, %s118
      %s120 = sphi 0, %s118
      %s121 = sphi 0, %s120
      %s135 = sphi 0, %s121
      %s139 = sphi 0, %s139
      %s141 = sphi 0, %s139
      %s142 = sphi 0, %s141
      %s156 = sphi 0, %s142
      %s160 = sphi 0, %s160
      %s162 = sphi 0, %s160
      %s163 = sphi 0, %s162
      %s177 = sphi 0, %s163
      %s181 = sphi 0, %s181
      %s183 = sphi 0, %s181
      %s184 = sphi 0, %s183
      %s198 = sphi 0, %s184
      %s202 = sphi 0, %s202
      %s204 = sphi 0, %s202
      %s205 = sphi 0, %s204
      %s219 = sphi 0, %s205
      %s223 = sphi 0, %s223
      %s225 = sphi 0, %s223
      %s226 = sphi 0, %s225
      %s240 = sphi 0, %s226
      %s244 = sphi 0, %s244
      %s246 = sphi 0, %s244
      %s247 = sphi 0, %s246
      %s261 = sphi 0, %s247
      %s265 = sphi 0, %s265
      %s267 = sphi 0, %s265
      %s268 = sphi 0, %s267
      %s282 = sphi 0, %s268
      %s288 = sphi 0, %s290
      %s291 = sphi 0, %s288
      %s292 = sphi 0, %s291
      %s308 = sphi 0, %s292
    $region4: #{tpu_custom_call.1} parent=1 // loop_header_branch
      %24 = sbr.rel (%p22) target = $region8
    $region5: #{tpu_custom_call.1} parent=1 // loop_body
      %s26 = ssub.s32 %s21, 1
      %s27 = ssub.s32 %s21, 2
      %s28 = sadd.s32 %s21, 1
      %s29 = ssub.s32 %s21, %s28
      %p30 = scmp.eq.s32.totalorder %s29, 0
      %s32 = sadd.s32 %s31, 1
      %s33 = scalar_select %p30, %s31, %s32
      %p36 = pneg %p30
      %p37 = scmp.eq.s32.totalorder %s21, 1
      %p38 = por %p36, %p37
      %p39 = scmp.ne.s32.totalorder %s31, %s34
      %p40 = scmp.eq.s32.totalorder %s21, 0
      %p41 = por %p39, %p40
      %p42 = scmp.ne.s32.totalorder %s31, %s34
      %p43 = scmp.eq.s32.totalorder %s26, 1
      %p44 = por %p42, %p43
      %p45 = scmp.ne.s32.totalorder %s34, %s35
      %p46 = scmp.eq.s32.totalorder %s26, 0
      %p47 = por %p45, %p46
      %p48 = scmp.ne.s32.totalorder %s34, %s35
      %p49 = scmp.eq.s32.totalorder %s27, 1
      %p50 = por %p48, %p49
      %p52 = scmp.ne.s32.totalorder %s35, %s51
      %p53 = scmp.eq.s32.totalorder %s27, 0
      %p54 = por %p52, %p53
      %s56 = sadd.s32 %s55, 1
      %p59 = scmp.eq.s32.totalorder %s21, 1
      %p60 = scmp.ne.s32.totalorder %s55, %s57
      %p61 = scmp.eq.s32.totalorder %s21, 0
      %p62 = por %p60, %p61
      %p63 = scmp.ne.s32.totalorder %s55, %s57
      %p64 = scmp.eq.s32.totalorder %s26, 1
      %p65 = por %p63, %p64
      %p66 = scmp.ne.s32.totalorder %s57, %s58
      %p67 = scmp.eq.s32.totalorder %s26, 0
      %p68 = por %p66, %p67
      %p69 = scmp.ne.s32.totalorder %s57, %s58
      %p70 = scmp.eq.s32.totalorder %s27, 1
      %p71 = por %p69, %p70
      %p73 = scmp.ne.s32.totalorder %s58, %s72
      %p74 = scmp.eq.s32.totalorder %s27, 0
      %p75 = por %p73, %p74
      %s77 = sadd.s32 %s76, 1
      %p80 = scmp.eq.s32.totalorder %s21, 1
      %p81 = scmp.ne.s32.totalorder %s76, %s78
      %p82 = scmp.eq.s32.totalorder %s21, 0
      %p83 = por %p81, %p82
      %p84 = scmp.ne.s32.totalorder %s76, %s78
      %p85 = scmp.eq.s32.totalorder %s26, 1
      %p86 = por %p84, %p85
      %p87 = scmp.ne.s32.totalorder %s78, %s79
      %p88 = scmp.eq.s32.totalorder %s26, 0
      %p89 = por %p87, %p88
      %p90 = scmp.ne.s32.totalorder %s78, %s79
      %p91 = scmp.eq.s32.totalorder %s27, 1
      %p92 = por %p90, %p91
      %p94 = scmp.ne.s32.totalorder %s79, %s93
      %p95 = scmp.eq.s32.totalorder %s27, 0
      %p96 = por %p94, %p95
      %s98 = sadd.s32 %s97, 1
      %p101 = scmp.eq.s32.totalorder %s21, 1
      %p102 = scmp.ne.s32.totalorder %s97, %s99
      %p103 = scmp.eq.s32.totalorder %s21, 0
      %p104 = por %p102, %p103
      %p105 = scmp.ne.s32.totalorder %s97, %s99
      %p106 = scmp.eq.s32.totalorder %s26, 1
      %p107 = por %p105, %p106
      %p108 = scmp.ne.s32.totalorder %s99, %s100
      %p109 = scmp.eq.s32.totalorder %s26, 0
      %p110 = por %p108, %p109
      %p111 = scmp.ne.s32.totalorder %s99, %s100
      %p112 = scmp.eq.s32.totalorder %s27, 1
      %p113 = por %p111, %p112
      %p115 = scmp.ne.s32.totalorder %s100, %s114
      %p116 = scmp.eq.s32.totalorder %s27, 0
      %p117 = por %p115, %p116
      %s119 = sadd.s32 %s118, 1
      %p122 = scmp.eq.s32.totalorder %s21, 1
      %p123 = scmp.ne.s32.totalorder %s118, %s120
      %p124 = scmp.eq.s32.totalorder %s21, 0
      %p125 = por %p123, %p124
      %p126 = scmp.ne.s32.totalorder %s118, %s120
      %p127 = scmp.eq.s32.totalorder %s26, 1
      %p128 = por %p126, %p127
      %p129 = scmp.ne.s32.totalorder %s120, %s121
      %p130 = scmp.eq.s32.totalorder %s26, 0
      %p131 = por %p129, %p130
      %p132 = scmp.ne.s32.totalorder %s120, %s121
      %p133 = scmp.eq.s32.totalorder %s27, 1
      %p134 = por %p132, %p133
      %p136 = scmp.ne.s32.totalorder %s121, %s135
      %p137 = scmp.eq.s32.totalorder %s27, 0
      %p138 = por %p136, %p137
      %s140 = sadd.s32 %s139, 1
      %p143 = scmp.eq.s32.totalorder %s21, 1
      %p144 = scmp.ne.s32.totalorder %s139, %s141
      %p145 = scmp.eq.s32.totalorder %s21, 0
      %p146 = por %p144, %p145
      %p147 = scmp.ne.s32.totalorder %s139, %s141
      %p148 = scmp.eq.s32.totalorder %s26, 1
      %p149 = por %p147, %p148
      %p150 = scmp.ne.s32.totalorder %s141, %s142
      %p151 = scmp.eq.s32.totalorder %s26, 0
      %p152 = por %p150, %p151
      %p153 = scmp.ne.s32.totalorder %s141, %s142
      %p154 = scmp.eq.s32.totalorder %s27, 1
      %p155 = por %p153, %p154
      %p157 = scmp.ne.s32.totalorder %s142, %s156
      %p158 = scmp.eq.s32.totalorder %s27, 0
      %p159 = por %p157, %p158
      %s161 = sadd.s32 %s160, 1
      %p164 = scmp.eq.s32.totalorder %s21, 1
      %p165 = scmp.ne.s32.totalorder %s160, %s162
      %p166 = scmp.eq.s32.totalorder %s21, 0
      %p167 = por %p165, %p166
      %p168 = scmp.ne.s32.totalorder %s160, %s162
      %p169 = scmp.eq.s32.totalorder %s26, 1
      %p170 = por %p168, %p169
      %p171 = scmp.ne.s32.totalorder %s162, %s163
      %p172 = scmp.eq.s32.totalorder %s26, 0
      %p173 = por %p171, %p172
      %p174 = scmp.ne.s32.totalorder %s162, %s163
      %p175 = scmp.eq.s32.totalorder %s27, 1
      %p176 = por %p174, %p175
      %p178 = scmp.ne.s32.totalorder %s163, %s177
      %p179 = scmp.eq.s32.totalorder %s27, 0
      %p180 = por %p178, %p179
      %s182 = sadd.s32 %s181, 1
      %p185 = scmp.eq.s32.totalorder %s21, 1
      %p186 = scmp.ne.s32.totalorder %s181, %s183
      %p187 = scmp.eq.s32.totalorder %s21, 0
      %p188 = por %p186, %p187
      %p189 = scmp.ne.s32.totalorder %s181, %s183
      %p190 = scmp.eq.s32.totalorder %s26, 1
      %p191 = por %p189, %p190
      %p192 = scmp.ne.s32.totalorder %s183, %s184
      %p193 = scmp.eq.s32.totalorder %s26, 0
      %p194 = por %p192, %p193
      %p195 = scmp.ne.s32.totalorder %s183, %s184
      %p196 = scmp.eq.s32.totalorder %s27, 1
      %p197 = por %p195, %p196
      %p199 = scmp.ne.s32.totalorder %s184, %s198
      %p200 = scmp.eq.s32.totalorder %s27, 0
      %p201 = por %p199, %p200
      %s203 = sadd.s32 %s202, 1
      %p206 = scmp.eq.s32.totalorder %s21, 1
      %p207 = scmp.ne.s32.totalorder %s202, %s204
      %p208 = scmp.eq.s32.totalorder %s21, 0
      %p209 = por %p207, %p208
      %p210 = scmp.ne.s32.totalorder %s202, %s204
      %p211 = scmp.eq.s32.totalorder %s26, 1
      %p212 = por %p210, %p211
      %p213 = scmp.ne.s32.totalorder %s204, %s205
      %p214 = scmp.eq.s32.totalorder %s26, 0
      %p215 = por %p213, %p214
      %p216 = scmp.ne.s32.totalorder %s204, %s205
      %p217 = scmp.eq.s32.totalorder %s27, 1
      %p218 = por %p216, %p217
      %p220 = scmp.ne.s32.totalorder %s205, %s219
      %p221 = scmp.eq.s32.totalorder %s27, 0
      %p222 = por %p220, %p221
      %s224 = sadd.s32 %s223, 1
      %p227 = scmp.eq.s32.totalorder %s21, 1
      %p228 = scmp.ne.s32.totalorder %s223, %s225
      %p229 = scmp.eq.s32.totalorder %s21, 0
      %p230 = por %p228, %p229
      %p231 = scmp.ne.s32.totalorder %s223, %s225
      %p232 = scmp.eq.s32.totalorder %s26, 1
      %p233 = por %p231, %p232
      %p234 = scmp.ne.s32.totalorder %s225, %s226
      %p235 = scmp.eq.s32.totalorder %s26, 0
      %p236 = por %p234, %p235
      %p237 = scmp.ne.s32.totalorder %s225, %s226
      %p238 = scmp.eq.s32.totalorder %s27, 1
      %p239 = por %p237, %p238
      %p241 = scmp.ne.s32.totalorder %s226, %s240
      %p242 = scmp.eq.s32.totalorder %s27, 0
      %p243 = por %p241, %p242
      %s245 = sadd.s32 %s244, 1
      %p248 = scmp.eq.s32.totalorder %s21, 1
      %p249 = scmp.ne.s32.totalorder %s244, %s246
      %p250 = scmp.eq.s32.totalorder %s21, 0
      %p251 = por %p249, %p250
      %p252 = scmp.ne.s32.totalorder %s244, %s246
      %p253 = scmp.eq.s32.totalorder %s26, 1
      %p254 = por %p252, %p253
      %p255 = scmp.ne.s32.totalorder %s246, %s247
      %p256 = scmp.eq.s32.totalorder %s26, 0
      %p257 = por %p255, %p256
      %p258 = scmp.ne.s32.totalorder %s246, %s247
      %p259 = scmp.eq.s32.totalorder %s27, 1
      %p260 = por %p258, %p259
      %p262 = scmp.ne.s32.totalorder %s247, %s261
      %p263 = scmp.eq.s32.totalorder %s27, 0
      %p264 = por %p262, %p263
      %s266 = sadd.s32 %s265, 1
      %p269 = scmp.eq.s32.totalorder %s21, 1
      %p270 = scmp.ne.s32.totalorder %s265, %s267
      %p271 = scmp.eq.s32.totalorder %s21, 0
      %p272 = por %p270, %p271
      %p273 = scmp.ne.s32.totalorder %s265, %s267
      %p274 = scmp.eq.s32.totalorder %s26, 1
      %p275 = por %p273, %p274
      %p276 = scmp.ne.s32.totalorder %s267, %s268
      %p277 = scmp.eq.s32.totalorder %s26, 0
      %p278 = por %p276, %p277
      %p279 = scmp.ne.s32.totalorder %s267, %s268
      %p280 = scmp.eq.s32.totalorder %s27, 1
      %p281 = por %p279, %p280
      %p283 = scmp.ne.s32.totalorder %s268, %s282
      %p284 = scmp.eq.s32.totalorder %s27, 0
      %p285 = por %p283, %p284
      %s286 = ssub.s32 %s21, %s28
      %p287 = scmp.eq.s32.totalorder %s286, 0
      %s289 = sadd.s32 %s288, 1
      %s290 = scalar_select %p287, %s288, %s289
      %p293 = pneg %p287
      %p294 = scmp.eq.s32.totalorder %s21, 1
      %p295 = por %p293, %p294
      %p296 = scmp.ne.s32.totalorder %s288, %s291
      %p297 = scmp.eq.s32.totalorder %s21, 0
      %p298 = por %p296, %p297
      %p299 = scmp.ne.s32.totalorder %s288, %s291
      %p300 = scmp.eq.s32.totalorder %s26, 1
      %p301 = por %p299, %p300
      %p302 = scmp.ne.s32.totalorder %s291, %s292
      %p303 = scmp.eq.s32.totalorder %s26, 0
      %p304 = por %p302, %p303
      %p305 = scmp.ne.s32.totalorder %s291, %s292
      %p306 = scmp.eq.s32.totalorder %s27, 1
      %p307 = por %p305, %p306
      %p309 = scmp.ne.s32.totalorder %s292, %s308
      %p310 = scmp.eq.s32.totalorder %s27, 0
      %p311 = por %p309, %p310
      %p312 = scmp.le.s32.totalorder 1, %s21
      %p313 = scmp.lt.s32.totalorder %s21, 3
      %p314 = pnand %p312, %p313
      %p315 = pneg %p314
      // Predicated region
      $region9: #{tpu_custom_call.1} parent=5 // pred_check
        _
      $region10: #{tpu_custom_call.1} parent=5 // pred_check_branch
        %317 = sbr.rel (%p314) target = $region12
      $region11: #{tpu_custom_call.1} parent=5 // pred_region
        %s318 = ssub.s32 %s21, 1
        // Predicated region
        $region13: #{tpu_custom_call.1} parent=11 // pred_check
          %p319 = pneg %p68
        $region14: #{tpu_custom_call.1} parent=11 // pred_check_branch
          %321 = sbr.rel (%p319) target = $region16
        $region15: #{tpu_custom_call.1} parent=11 // pred_region
          _
        $region16: #{tpu_custom_call.1} parent=11 // pred_fallthru
          _
        // Predicated region
        $region17: #{tpu_custom_call.1} parent=11 // pred_check
          %p322 = pneg %p89
        $region18: #{tpu_custom_call.1} parent=11 // pred_check_branch
          %324 = sbr.rel (%p322) target = $region20
        $region19: #{tpu_custom_call.1} parent=11 // pred_region
          _
        $region20: #{tpu_custom_call.1} parent=11 // pred_fallthru
          _
        // Predicated region
        $region21: #{tpu_custom_call.1} parent=11 // pred_check
          %p325 = pneg %p110
        $region22: #{tpu_custom_call.1} parent=11 // pred_check_branch
          %327 = sbr.rel (%p325) target = $region24
        $region23: #{tpu_custom_call.1} parent=11 // pred_region
          _
        $region24: #{tpu_custom_call.1} parent=11 // pred_fallthru
          _
        // Predicated region
        $region25: #{tpu_custom_call.1} parent=11 // pred_check
          %p328 = pneg %p131
        $region26: #{tpu_custom_call.1} parent=11 // pred_check_branch
          %330 = sbr.rel (%p328) target = $region28
        $region27: #{tpu_custom_call.1} parent=11 // pred_region
          _
        $region28: #{tpu_custom_call.1} parent=11 // pred_fallthru
          _
        // Predicated region
        $region29: #{tpu_custom_call.1} parent=11 // pred_check
          %p331 = pneg %p152
        $region30: #{tpu_custom_call.1} parent=11 // pred_check_branch
          %333 = sbr.rel (%p331) target = $region32
        $region31: #{tpu_custom_call.1} parent=11 // pred_region
          _
        $region32: #{tpu_custom_call.1} parent=11 // pred_fallthru
          _
        // Predicated region
        $region33: #{tpu_custom_call.1} parent=11 // pred_check
          %p334 = pneg %p173
        $region34: #{tpu_custom_call.1} parent=11 // pred_check_branch
          %336 = sbr.rel (%p334) target = $region36
        $region35: #{tpu_custom_call.1} parent=11 // pred_region
          _
        $region36: #{tpu_custom_call.1} parent=11 // pred_fallthru
          _
        // Predicated region
        $region37: #{tpu_custom_call.1} parent=11 // pred_check
          %p337 = pneg %p194
        $region38: #{tpu_custom_call.1} parent=11 // pred_check_branch
          %339 = sbr.rel (%p337) target = $region40
        $region39: #{tpu_custom_call.1} parent=11 // pred_region
          _
        $region40: #{tpu_custom_call.1} parent=11 // pred_fallthru
          _
        // Predicated region
        $region41: #{tpu_custom_call.1} parent=11 // pred_check
          %p340 = pneg %p215
        $region42: #{tpu_custom_call.1} parent=11 // pred_check_branch
          %342 = sbr.rel (%p340) target = $region44
        $region43: #{tpu_custom_call.1} parent=11 // pred_region
          _
        $region44: #{tpu_custom_call.1} parent=11 // pred_fallthru
          _
        // Predicated region
        $region45: #{tpu_custom_call.1} parent=11 // pred_check
          %p343 = pneg %p236
        $region46: #{tpu_custom_call.1} parent=11 // pred_check_branch
          %345 = sbr.rel (%p343) target = $region48
        $region47: #{tpu_custom_call.1} parent=11 // pred_region
          _
        $region48: #{tpu_custom_call.1} parent=11 // pred_fallthru
          _
        // Predicated region
        $region49: #{tpu_custom_call.1} parent=11 // pred_check
          %p346 = pneg %p257
        $region50: #{tpu_custom_call.1} parent=11 // pred_check_branch
          %348 = sbr.rel (%p346) target = $region52
        $region51: #{tpu_custom_call.1} parent=11 // pred_region
          _
        $region52: #{tpu_custom_call.1} parent=11 // pred_fallthru
          _
        // Predicated region
        $region53: #{tpu_custom_call.1} parent=11 // pred_check
          %p349 = pneg %p278
        $region54: #{tpu_custom_call.1} parent=11 // pred_check_branch
          %351 = sbr.rel (%p349) target = $region56
        $region55: #{tpu_custom_call.1} parent=11 // pred_region
          _
        $region56: #{tpu_custom_call.1} parent=11 // pred_fallthru
          _
      $region12: #{tpu_custom_call.1} parent=5 // pred_fallthru
        _
      %p352 = scmp.lt.s32.totalorder %s21, 2
      // Predicated region
      $region57: #{tpu_custom_call.1} parent=5 // pred_check
        %p353 = pneg %p352
      $region58: #{tpu_custom_call.1} parent=5 // pred_check_branch
        %355 = sbr.rel (%p353) target = $region60
      $region59: #{tpu_custom_call.1} parent=5 // pred_region
        // Predicated region
        $region61: #{tpu_custom_call.1} parent=59 // pred_check
          %p356 = pneg %p41
        $region62: #{tpu_custom_call.1} parent=59 // pred_check_branch
          %358 = sbr.rel (%p356) target = $region64
        $region63: #{tpu_custom_call.1} parent=59 // pred_region
          %s359 = smul.u32 8, %s21
          %p360 = scmp.lt.s32.totalorder %s359, 15
          %s361 = scalar_select %p360, %s359, 15
          %s362 = smul.addr %s361, 8
          %s363 = scalar_lea.vmem %s0, %s362
          %s364 = smul.u32 8, %s21
        $region64: #{tpu_custom_call.1} parent=59 // pred_fallthru
          _
      $region60: #{tpu_custom_call.1} parent=5 // pred_fallthru
        _
      %p365 = scmp.le.s32.totalorder 1, %s21
      %p366 = scmp.lt.s32.totalorder %s21, 3
      %p367 = pnand %p365, %p366
      %p368 = pneg %p367
      // Predicated region
      $region65: #{tpu_custom_call.1} parent=5 // pred_check
        _
      $region66: #{tpu_custom_call.1} parent=5 // pred_check_branch
        %370 = sbr.rel (%p367) target = $region68
      $region67: #{tpu_custom_call.1} parent=5 // pred_region
        %s371 = ssub.s32 %s21, 1
        %s372 = smul.u32 8, %s26
        %p373 = scmp.lt.s32.totalorder %s372, 15
        %s374 = scalar_select %p373, %s372, 15
        %s375 = smul.addr %s374, 8
        %s376 = scalar_lea.vmem %s0, %s375
        %p377 = pneg %p47
        %p378 = pneg %p44
        %p379 = pneg %p68
        %p380 = pneg %p65
        %p381 = pneg %p89
        %p382 = pneg %p86
        %p383 = pneg %p110
        %p384 = pneg %p107
        %p385 = pneg %p131
        %p386 = pneg %p128
        %p387 = pneg %p152
        %p388 = pneg %p149
        %p389 = pneg %p173
        %p390 = pneg %p170
        %p391 = pneg %p194
        %p392 = pneg %p191
        %p393 = pneg %p215
        %p394 = pneg %p212
        %p395 = pneg %p236
        %p396 = pneg %p233
        %p397 = pneg %p257
        %p398 = pneg %p254
        %p399 = pneg %p278
        %p400 = pneg %p275
        %p401 = pneg %p304
        %p402 = pneg %p301
        %s403 = sand.u32 %s291, 1
        %s404 = scalar_lea.sflag [#allocation3], %s403
        %s405 = sand.u32 %s291, 1
        %s406 = smul.addr %s405, 8
        %s407 = scalar_lea.vmem [#allocation2], %s406
        %s408 = smul.u32 8, %s26
        %p409 = scmp.lt.s32.totalorder %s408, 15
        %s410 = scalar_select %p409, %s408, 15
        %s411 = smul.addr %s410, 8
        %s412 = scalar_lea.vmem %s0, %s411
        %s413 = smul.u32 8, %s26
        %v415 = vld [vmem:[%s412] sm:$0xff]
        %v416 = vld [vmem:[%s412 + $0x8] sm:$0xff]
        %v417 = vld [vmem:[%s412 + $0x10] sm:$0xff]
        %v418 = vld [vmem:[%s412 + $0x18] sm:$0xff]
        %v419 = vld [vmem:[%s412 + $0x20] sm:$0xff]
        %v420 = vld [vmem:[%s412 + $0x28] sm:$0xff]
        %v421 = vld [vmem:[%s412 + $0x30] sm:$0xff]
        %v422 = vld [vmem:[%s412 + $0x38] sm:$0xff]
        %v423 = vpack.c.bf16 %v416, %v415
        %v424 = vpack.c.bf16 %v418, %v417
        %v425 = vpack.c.bf16 %v420, %v419
        %v426 = vpack.c.bf16 %v422, %v421
        %v427 = vld [vmem:[%s1] sm:$0xf]
        %vm428 = vcmask 64512
        %v430 = vsel %vm428, %v423, 0
        %v433 = vsel %vm428, %v424, 0
        %v436 = vsel %vm428, %v425, 0
        %v439 = vsel %vm428, %v426, 0
        %vm441 = vcmask 1043456
        %v443 = vsel %vm441, %v427, 0
        %445 = vmatprep.subr.bf16.mxu0 0
        %446 = vmatpush1.bf16.msra.mxu0 %v443
        %447 = vmatprep.subr.bf16.mxu0 0
        %448 = vmatpush1.bf16.msra.mxu0 0
        %449 = vmatprep.subr.bf16.mxu0 0
        %450 = vmatpush1.bf16.msra.mxu0 0
        %451 = vmatprep.subr.bf16.mxu0 0
        %452 = vmatpush1.bf16.msra.mxu0 0
        %453 = vmatprep.subr.bf16.mxu0 0
        %454 = vmatpush1.bf16.msra.mxu0 0
        %455 = vmatprep.subr.bf16.mxu0 0
        %456 = vmatpush1.bf16.msra.mxu0 0
        %457 = vmatprep.subr.bf16.mxu0 0
        %458 = vmatpush1.bf16.msra.mxu0 0
        %459 = vmatprep.subr.bf16.mxu0 0
        %460 = vmatpush1.bf16.msra.mxu0 0
        %461 = vmatprep.subr.bf16.mxu0 0
        %462 = vmatpush1.bf16.msra.mxu0 0
        %463 = vmatprep.subr.bf16.mxu0 0
        %464 = vmatpush1.bf16.msra.mxu0 0
        %465 = vmatprep.subr.bf16.mxu0 0
        %466 = vmatpush1.bf16.msra.mxu0 0
        %467 = vmatprep.subr.bf16.mxu0 0
        %468 = vmatpush1.bf16.msra.mxu0 0
        %469 = vmatprep.subr.bf16.mxu0 0
        %470 = vmatpush1.bf16.msra.mxu0 0
        %471 = vmatprep.subr.bf16.mxu0 0
        %472 = vmatpush1.bf16.msra.mxu0 0
        %473 = vmatprep.subr.bf16.mxu0 0
        %474 = vmatpush1.bf16.msra.mxu0 0
        %475 = vmatprep.subr.bf16.mxu0 0
        %476 = vmatpush1.bf16.msra.mxu0 0
        %477 = vmatprep.mubr.bf16.mxu0 0
        %478 = vmatmul.mubr.bf16.gmra.mrb[0].mxu0 %v430
        %v479 = vpop.f32.mrb[0].mxu0
        %v480 = vadd.f32 0.0, %v479
        %v481 = vpop.f32.mrb[0].mxu0
        %v482 = vpop.f32.mrb[0].mxu0
        %v483 = vadd.f32 0.0, %v482
        %v484 = vpop.f32.mrb[0].mxu0
        %485 = vmatprep.mubr.bf16.mxu0 0
        %486 = vmatmul.mubr.bf16.gmra.mrb[0].mxu0 %v433
        %v487 = vpop.f32.mrb[0].mxu0
        %v488 = vadd.f32 0.0, %v487
        %v489 = vpop.f32.mrb[0].mxu0
        %v490 = vpop.f32.mrb[0].mxu0
        %v491 = vadd.f32 0.0, %v490
        %v492 = vpop.f32.mrb[0].mxu0
        %493 = vmatprep.mubr.bf16.mxu0 0
        %494 = vmatmul.mubr.bf16.gmra.mrb[0].mxu0 %v436
        %v495 = vpop.f32.mrb[0].mxu0
        %v496 = vadd.f32 0.0, %v495
        %v497 = vpop.f32.mrb[0].mxu0
        %v498 = vpop.f32.mrb[0].mxu0
        %v499 = vadd.f32 0.0, %v498
        %v500 = vpop.f32.mrb[0].mxu0
        %501 = vmatprep.mubr.bf16.mxu0 0
        %502 = vmatmul.mubr.bf16.gmra.mrb[0].mxu0 %v439
        %v503 = vpop.f32.mrb[0].mxu0
        %v504 = vadd.f32 0.0, %v503
        %v505 = vpop.f32.mrb[0].mxu0
        %v506 = vpop.f32.mrb[0].mxu0
        %v507 = vadd.f32 0.0, %v506
        %v508 = vpop.f32.mrb[0].mxu0
        %509 = vdwg.mxu0
        %v510 = vand.u32 2147483647, %v480
        %vm511 = vcmp.le.f32.partialorder %v510, 0.7853982
        %vm512 = vcmp.lt.s32.totalorder %v480, 0
        %v513 = vand.u32 %v480, 2139095040
        %v514 = vshrl.u32 %v513, 23
        %v515 = vsub.s32 %v514, 127
        %v516 = vand.u32 2147483647, %v480
        %v517 = vand.u32 %v516, 8388607
        %v518 = vor.u32 %v517, 8388608
        %v519 = vsub.s32 0, %v518
        %v520 = vadd.s32 %v515, 1
        %vm521 = vcmp.gt.s32.totalorder %v520, 0
        %v522 = vsel %vm521, %v520, 0
        %v523 = vshrl.u32 %v522, 5
        %v524 = vand.u32 %v522, 31
        %v525 = vsub.s32 32, %v524
        %v526 = vshrl.u32 683565275, %v525
        %v527 = vshll.u32 683565275, %v524
        %v528 = vshrl.u32 2475754826, %v525
        %v529 = vor.u32 %v527, %v528
        %v530 = vshll.u32 2475754826, %v524
        %v531 = vshrl.u32 2131351028, %v525
        %v532 = vor.u32 %v530, %v531
        %v533 = vshll.u32 2131351028, %v524
        %v534 = vshrl.u32 2102212464, %v525
        %v535 = vor.u32 %v533, %v534
        %v536 = vshll.u32 2102212464, %v524
        %v537 = vshrl.u32 920167782, %v525
        %v538 = vor.u32 %v536, %v537
        %v539 = vshll.u32 920167782, %v524
        %v540 = vshrl.u32 1326507024, %v525
        %v541 = vor.u32 %v539, %v540
        %vm542 = vcmp.lt.s32.totalorder %v523, 1
        %vm543 = vcmp.lt.s32.totalorder %v523, 2
        %vm544 = vcmp.lt.s32.totalorder %v523, 3
        %vm545 = vcmp.lt.s32.totalorder %v523, 4
        %v546 = vsel %vm542, %v526, %v529
        %v547 = vsel %vm545, %v535, 2102212464
        %v548 = vsel %vm544, %v532, %v547
        %v549 = vsel %vm543, %v546, %v548
        %v550 = vsel %vm542, %v529, %v532
        %v551 = vsel %vm545, %v538, 920167782
        %v552 = vsel %vm544, %v535, %v551
        %v553 = vsel %vm543, %v550, %v552
        %v554 = vsel %vm542, %v532, %v535
        %v555 = vsel %vm545, %v541, 1326507024
        %v556 = vsel %vm544, %v538, %v555
        %v557 = vsel %vm543, %v554, %v556
        %v558 = vshll.u32 %v518, 8
        %v559 = vmul.u32.u64.compose %v558, %v557
        %v560 = vextract.low.u32 %v559
        %v561 = vextract.high.u32 %v559
        %v562 = vmul.u32.u64.compose %v558, %v553
        %v563 = vextract.low.u32 %v562
        %v564 = vextract.high.u32 %v562
        %v565 = vmul.u32 %v558, %v549
        %v566 = vadd.s32 %v561, %v563
        %vm567 = vc.u32 %v561, %v563
        %v568 = vadd.s32 %v564, 1
        %v569 = vsel %vm567, %v568, %v564
        %v570 = vadd.s32 %v565, %v569
        %v571 = vadd.s32 %v570, 536870912
        %v572 = vshrl.u32 %v571, 30
        %v573 = vshll.u32 %v572, 30
        %v574 = vsub.s32 %v570, %v573
        %vm575 = vcmp.lt.s32.totalorder %v574, 0
        %v576 = vsub.s32 0, %v574
        %v577 = vsel %vm575, %v576, %v574
        %v578 = vclz %v577
        %v579 = vsub.s32 %v578, 2
        %vm580 = vcmp.gt.s32.totalorder 0, %v579
        %v581 = vsel %vm580, 0, %v579
        %v582 = vsub.s32 32, %v581
        %v583 = vshll.u32 %v574, %v581
        %v584 = vshrl.u32 %v566, %v582
        %v585 = vor.u32 %v583, %v584
        %v586 = vsub.s32 4294967266, %v581
        %v587 = vadd.s32 %v586, 127
        %v588 = vshll.u32 %v587, 23
        %v589 = vor.u32 4788187, %v588
        %v590 = vand.u32 2147483647, %v589
        %v592 = vcvt.s32.f32 %v585
        %v593 = vmul.f32 %v592, %v590
        %v594 = vxor.u32 %v593, 2147483648
        %v595 = vsel %vm512, %v594, %v593
        %v596 = vsub.s32 4, %v572
        %v597 = vsel %vm512, %v596, %v572
        %v598 = vsel %vm511, %v480, %v595
        %v599 = vsel %vm511, 0, %v597
        %v600 = vcosq.f32.pop %v598
        %v601 = vsinq.f32.pop %v598
        %vm602 = vweird.f32 %v480
        %v603 = vadd.s32 %v599, 3
        %v604 = vand.u32 %v603, 3
        %vm605 = vcmp.lt.s32.totalorder %v604, 2
        %vm606 = vcmp.eq.s32.totalorder %v604, 0
        %v607 = vxor.u32 %v601, 2147483648
        %v608 = vsel %vm606, %v600, %v607
        %vm609 = vcmp.eq.s32.totalorder %v604, 2
        %v610 = vxor.u32 %v600, 2147483648
        %v611 = vsel %vm609, %v610, %v601
        %v612 = vsel %vm605, %v608, %v611
        %v613 = vsel %vm602, nan, %v612
        %v614 = vand.u32 2147483647, %v483
        %vm615 = vcmp.le.f32.partialorder %v614, 0.7853982
        %vm616 = vcmp.lt.s32.totalorder %v483, 0
        %v617 = vand.u32 %v483, 2139095040
        %v618 = vshrl.u32 %v617, 23
        %v619 = vsub.s32 %v618, 127
        %v620 = vand.u32 2147483647, %v483
        %v621 = vand.u32 %v620, 8388607
        %v622 = vor.u32 %v621, 8388608
        %v623 = vsub.s32 0, %v622
        %v624 = vadd.s32 %v619, 1
        %vm625 = vcmp.gt.s32.totalorder %v624, 0
        %v626 = vsel %vm625, %v624, 0
        %v627 = vshrl.u32 %v626, 5
        %v628 = vand.u32 %v626, 31
        %v629 = vsub.s32 32, %v628
        %v630 = vshrl.u32 683565275, %v629
        %v631 = vshll.u32 683565275, %v628
        %v632 = vshrl.u32 2475754826, %v629
        %v633 = vor.u32 %v631, %v632
        %v634 = vshll.u32 2475754826, %v628
        %v635 = vshrl.u32 2131351028, %v629
        %v636 = vor.u32 %v634, %v635
        %v637 = vshll.u32 2131351028, %v628
        %v638 = vshrl.u32 2102212464, %v629
        %v639 = vor.u32 %v637, %v638
        %v640 = vshll.u32 2102212464, %v628
        %v641 = vshrl.u32 920167782, %v629
        %v642 = vor.u32 %v640, %v641
        %v643 = vshll.u32 920167782, %v628
        %v644 = vshrl.u32 1326507024, %v629
        %v645 = vor.u32 %v643, %v644
        %vm646 = vcmp.lt.s32.totalorder %v627, 1
        %vm647 = vcmp.lt.s32.totalorder %v627, 2
        %vm648 = vcmp.lt.s32.totalorder %v627, 3
        %vm649 = vcmp.lt.s32.totalorder %v627, 4
        %v650 = vsel %vm646, %v630, %v633
        %v651 = vsel %vm649, %v639, 2102212464
        %v652 = vsel %vm648, %v636, %v651
        %v653 = vsel %vm647, %v650, %v652
        %v654 = vsel %vm646, %v633, %v636
        %v655 = vsel %vm649, %v642, 920167782
        %v656 = vsel %vm648, %v639, %v655
        %v657 = vsel %vm647, %v654, %v656
        %v658 = vsel %vm646, %v636, %v639
        %v659 = vsel %vm649, %v645, 1326507024
        %v660 = vsel %vm648, %v642, %v659
        %v661 = vsel %vm647, %v658, %v660
        %v662 = vshll.u32 %v622, 8
        %v663 = vmul.u32.u64.compose %v662, %v661
        %v664 = vextract.low.u32 %v663
        %v665 = vextract.high.u32 %v663
        %v666 = vmul.u32.u64.compose %v662, %v657
        %v667 = vextract.low.u32 %v666
        %v668 = vextract.high.u32 %v666
        %v669 = vmul.u32 %v662, %v653
        %v670 = vadd.s32 %v665, %v667
        %vm671 = vc.u32 %v665, %v667
        %v672 = vadd.s32 %v668, 1
        %v673 = vsel %vm671, %v672, %v668
        %v674 = vadd.s32 %v669, %v673
        %v675 = vadd.s32 %v674, 536870912
        %v676 = vshrl.u32 %v675, 30
        %v677 = vshll.u32 %v676, 30
        %v678 = vsub.s32 %v674, %v677
        %vm679 = vcmp.lt.s32.totalorder %v678, 0
        %v680 = vsub.s32 0, %v678
        %v681 = vsel %vm679, %v680, %v678
        %v682 = vclz %v681
        %v683 = vsub.s32 %v682, 2
        %vm684 = vcmp.gt.s32.totalorder 0, %v683
        %v685 = vsel %vm684, 0, %v683
        %v686 = vsub.s32 32, %v685
        %v687 = vshll.u32 %v678, %v685
        %v688 = vshrl.u32 %v670, %v686
        %v689 = vor.u32 %v687, %v688
        %v690 = vsub.s32 4294967266, %v685
        %v691 = vadd.s32 %v690, 127
        %v692 = vshll.u32 %v691, 23
        %v693 = vor.u32 4788187, %v692
        %v694 = vand.u32 2147483647, %v693
        %v696 = vcvt.s32.f32 %v689
        %v697 = vmul.f32 %v696, %v694
        %v698 = vxor.u32 %v697, 2147483648
        %v699 = vsel %vm616, %v698, %v697
        %v700 = vsub.s32 4, %v676
        %v701 = vsel %vm616, %v700, %v676
        %v702 = vsel %vm615, %v483, %v699
        %v703 = vsel %vm615, 0, %v701
        %v704 = vcosq.f32.pop %v702
        %v705 = vsinq.f32.pop %v702
        %vm706 = vweird.f32 %v483
        %v707 = vadd.s32 %v703, 3
        %v708 = vand.u32 %v707, 3
        %vm709 = vcmp.lt.s32.totalorder %v708, 2
        %vm710 = vcmp.eq.s32.totalorder %v708, 0
        %v711 = vxor.u32 %v705, 2147483648
        %v712 = vsel %vm710, %v704, %v711
        %vm713 = vcmp.eq.s32.totalorder %v708, 2
        %v714 = vxor.u32 %v704, 2147483648
        %v715 = vsel %vm713, %v714, %v705
        %v716 = vsel %vm709, %v712, %v715
        %v717 = vsel %vm706, nan, %v716
        %v718 = vand.u32 2147483647, %v488
        %vm719 = vcmp.le.f32.partialorder %v718, 0.7853982
        %vm720 = vcmp.lt.s32.totalorder %v488, 0
        %v721 = vand.u32 %v488, 2139095040
        %v722 = vshrl.u32 %v721, 23
        %v723 = vsub.s32 %v722, 127
        %v724 = vand.u32 2147483647, %v488
        %v725 = vand.u32 %v724, 8388607
        %v726 = vor.u32 %v725, 8388608
        %v727 = vsub.s32 0, %v726
        %v728 = vadd.s32 %v723, 1
        %vm729 = vcmp.gt.s32.totalorder %v728, 0
        %v730 = vsel %vm729, %v728, 0
        %v731 = vshrl.u32 %v730, 5
        %v732 = vand.u32 %v730, 31
        %v733 = vsub.s32 32, %v732
        %v734 = vshrl.u32 683565275, %v733
        %v735 = vshll.u32 683565275, %v732
        %v736 = vshrl.u32 2475754826, %v733
        %v737 = vor.u32 %v735, %v736
        %v738 = vshll.u32 2475754826, %v732
        %v739 = vshrl.u32 2131351028, %v733
        %v740 = vor.u32 %v738, %v739
        %v741 = vshll.u32 2131351028, %v732
        %v742 = vshrl.u32 2102212464, %v733
        %v743 = vor.u32 %v741, %v742
        %v744 = vshll.u32 2102212464, %v732
        %v745 = vshrl.u32 920167782, %v733
        %v746 = vor.u32 %v744, %v745
        %v747 = vshll.u32 920167782, %v732
        %v748 = vshrl.u32 1326507024, %v733
        %v749 = vor.u32 %v747, %v748
        %vm750 = vcmp.lt.s32.totalorder %v731, 1
        %vm751 = vcmp.lt.s32.totalorder %v731, 2
        %vm752 = vcmp.lt.s32.totalorder %v731, 3
        %vm753 = vcmp.lt.s32.totalorder %v731, 4
        %v754 = vsel %vm750, %v734, %v737
        %v755 = vsel %vm753, %v743, 2102212464
        %v756 = vsel %vm752, %v740, %v755
        %v757 = vsel %vm751, %v754, %v756
        %v758 = vsel %vm750, %v737, %v740
        %v759 = vsel %vm753, %v746, 920167782
        %v760 = vsel %vm752, %v743, %v759
        %v761 = vsel %vm751, %v758, %v760
        %v762 = vsel %vm750, %v740, %v743
        %v763 = vsel %vm753, %v749, 1326507024
        %v764 = vsel %vm752, %v746, %v763
        %v765 = vsel %vm751, %v762, %v764
        %v766 = vshll.u32 %v726, 8
        %v767 = vmul.u32.u64.compose %v766, %v765
        %v768 = vextract.low.u32 %v767
        %v769 = vextract.high.u32 %v767
        %v770 = vmul.u32.u64.compose %v766, %v761
        %v771 = vextract.low.u32 %v770
        %v772 = vextract.high.u32 %v770
        %v773 = vmul.u32 %v766, %v757
        %v774 = vadd.s32 %v769, %v771
        %vm775 = vc.u32 %v769, %v771
        %v776 = vadd.s32 %v772, 1
        %v777 = vsel %vm775, %v776, %v772
        %v778 = vadd.s32 %v773, %v777
        %v779 = vadd.s32 %v778, 536870912
        %v780 = vshrl.u32 %v779, 30
        %v781 = vshll.u32 %v780, 30
        %v782 = vsub.s32 %v778, %v781
        %vm783 = vcmp.lt.s32.totalorder %v782, 0
        %v784 = vsub.s32 0, %v782
        %v785 = vsel %vm783, %v784, %v782
        %v786 = vclz %v785
        %v787 = vsub.s32 %v786, 2
        %vm788 = vcmp.gt.s32.totalorder 0, %v787
        %v789 = vsel %vm788, 0, %v787
        %v790 = vsub.s32 32, %v789
        %v791 = vshll.u32 %v782, %v789
        %v792 = vshrl.u32 %v774, %v790
        %v793 = vor.u32 %v791, %v792
        %v794 = vsub.s32 4294967266, %v789
        %v795 = vadd.s32 %v794, 127
        %v796 = vshll.u32 %v795, 23
        %v797 = vor.u32 4788187, %v796
        %v798 = vand.u32 2147483647, %v797
        %v800 = vcvt.s32.f32 %v793
        %v801 = vmul.f32 %v800, %v798
        %v802 = vxor.u32 %v801, 2147483648
        %v803 = vsel %vm720, %v802, %v801
        %v804 = vsub.s32 4, %v780
        %v805 = vsel %vm720, %v804, %v780
        %v806 = vsel %vm719, %v488, %v803
        %v807 = vsel %vm719, 0, %v805
        %v808 = vcosq.f32.pop %v806
        %v809 = vsinq.f32.pop %v806
        %vm810 = vweird.f32 %v488
        %v811 = vadd.s32 %v807, 3
        %v812 = vand.u32 %v811, 3
        %vm813 = vcmp.lt.s32.totalorder %v812, 2
        %vm814 = vcmp.eq.s32.totalorder %v812, 0
        %v815 = vxor.u32 %v809, 2147483648
        %v816 = vsel %vm814, %v808, %v815
        %vm817 = vcmp.eq.s32.totalorder %v812, 2
        %v818 = vxor.u32 %v808, 2147483648
        %v819 = vsel %vm817, %v818, %v809
        %v820 = vsel %vm813, %v816, %v819
        %v821 = vsel %vm810, nan, %v820
        %v822 = vand.u32 2147483647, %v491
        %vm823 = vcmp.le.f32.partialorder %v822, 0.7853982
        %vm824 = vcmp.lt.s32.totalorder %v491, 0
        %v825 = vand.u32 %v491, 2139095040
        %v826 = vshrl.u32 %v825, 23
        %v827 = vsub.s32 %v826, 127
        %v828 = vand.u32 2147483647, %v491
        %v829 = vand.u32 %v828, 8388607
        %v830 = vor.u32 %v829, 8388608
        %v831 = vsub.s32 0, %v830
        %v832 = vadd.s32 %v827, 1
        %vm833 = vcmp.gt.s32.totalorder %v832, 0
        %v834 = vsel %vm833, %v832, 0
        %v835 = vshrl.u32 %v834, 5
        %v836 = vand.u32 %v834, 31
        %v837 = vsub.s32 32, %v836
        %v838 = vshrl.u32 683565275, %v837
        %v839 = vshll.u32 683565275, %v836
        %v840 = vshrl.u32 2475754826, %v837
        %v841 = vor.u32 %v839, %v840
        %v842 = vshll.u32 2475754826, %v836
        %v843 = vshrl.u32 2131351028, %v837
        %v844 = vor.u32 %v842, %v843
        %v845 = vshll.u32 2131351028, %v836
        %v846 = vshrl.u32 2102212464, %v837
        %v847 = vor.u32 %v845, %v846
        %v848 = vshll.u32 2102212464, %v836
        %v849 = vshrl.u32 920167782, %v837
        %v850 = vor.u32 %v848, %v849
        %v851 = vshll.u32 920167782, %v836
        %v852 = vshrl.u32 1326507024, %v837
        %v853 = vor.u32 %v851, %v852
        %vm854 = vcmp.lt.s32.totalorder %v835, 1
        %vm855 = vcmp.lt.s32.totalorder %v835, 2
        %vm856 = vcmp.lt.s32.totalorder %v835, 3
        %vm857 = vcmp.lt.s32.totalorder %v835, 4
        %v858 = vsel %vm854, %v838, %v841
        %v859 = vsel %vm857, %v847, 2102212464
        %v860 = vsel %vm856, %v844, %v859
        %v861 = vsel %vm855, %v858, %v860
        %v862 = vsel %vm854, %v841, %v844
        %v863 = vsel %vm857, %v850, 920167782
        %v864 = vsel %vm856, %v847, %v863
        %v865 = vsel %vm855, %v862, %v864
        %v866 = vsel %vm854, %v844, %v847
        %v867 = vsel %vm857, %v853, 1326507024
        %v868 = vsel %vm856, %v850, %v867
        %v869 = vsel %vm855, %v866, %v868
        %v870 = vshll.u32 %v830, 8
        %v871 = vmul.u32.u64.compose %v870, %v869
        %v872 = vextract.low.u32 %v871
        %v873 = vextract.high.u32 %v871
        %v874 = vmul.u32.u64.compose %v870, %v865
        %v875 = vextract.low.u32 %v874
        %v876 = vextract.high.u32 %v874
        %v877 = vmul.u32 %v870, %v861
        %v878 = vadd.s32 %v873, %v875
        %vm879 = vc.u32 %v873, %v875
        %v880 = vadd.s32 %v876, 1
        %v881 = vsel %vm879, %v880, %v876
        %v882 = vadd.s32 %v877, %v881
        %v883 = vadd.s32 %v882, 536870912
        %v884 = vshrl.u32 %v883, 30
        %v885 = vshll.u32 %v884, 30
        %v886 = vsub.s32 %v882, %v885
        %vm887 = vcmp.lt.s32.totalorder %v886, 0
        %v888 = vsub.s32 0, %v886
        %v889 = vsel %vm887, %v888, %v886
        %v890 = vclz %v889
        %v891 = vsub.s32 %v890, 2
        %vm892 = vcmp.gt.s32.totalorder 0, %v891
        %v893 = vsel %vm892, 0, %v891
        %v894 = vsub.s32 32, %v893
        %v895 = vshll.u32 %v886, %v893
        %v896 = vshrl.u32 %v878, %v894
        %v897 = vor.u32 %v895, %v896
        %v898 = vsub.s32 4294967266, %v893
        %v899 = vadd.s32 %v898, 127
        %v900 = vshll.u32 %v899, 23
        %v901 = vor.u32 4788187, %v900
        %v902 = vand.u32 2147483647, %v901
        %v904 = vcvt.s32.f32 %v897
        %v905 = vmul.f32 %v904, %v902
        %v906 = vxor.u32 %v905, 2147483648
        %v907 = vsel %vm824, %v906, %v905
        %v908 = vsub.s32 4, %v884
        %v909 = vsel %vm824, %v908, %v884
        %v910 = vsel %vm823, %v491, %v907
        %v911 = vsel %vm823, 0, %v909
        %v912 = vcosq.f32.pop %v910
        %v913 = vsinq.f32.pop %v910
        %vm914 = vweird.f32 %v491
        %v915 = vadd.s32 %v911, 3
        %v916 = vand.u32 %v915, 3
        %vm917 = vcmp.lt.s32.totalorder %v916, 2
        %vm918 = vcmp.eq.s32.totalorder %v916, 0
        %v919 = vxor.u32 %v913, 2147483648
        %v920 = vsel %vm918, %v912, %v919
        %vm921 = vcmp.eq.s32.totalorder %v916, 2
        %v922 = vxor.u32 %v912, 2147483648
        %v923 = vsel %vm921, %v922, %v913
        %v924 = vsel %vm917, %v920, %v923
        %v925 = vsel %vm914, nan, %v924
        %v926 = vand.u32 2147483647, %v496
        %vm927 = vcmp.le.f32.partialorder %v926, 0.7853982
        %vm928 = vcmp.lt.s32.totalorder %v496, 0
        %v929 = vand.u32 %v496, 2139095040
        %v930 = vshrl.u32 %v929, 23
        %v931 = vsub.s32 %v930, 127
        %v932 = vand.u32 2147483647, %v496
        %v933 = vand.u32 %v932, 8388607
        %v934 = vor.u32 %v933, 8388608
        %v935 = vsub.s32 0, %v934
        %v936 = vadd.s32 %v931, 1
        %vm937 = vcmp.gt.s32.totalorder %v936, 0
        %v938 = vsel %vm937, %v936, 0
        %v939 = vshrl.u32 %v938, 5
        %v940 = vand.u32 %v938, 31
        %v941 = vsub.s32 32, %v940
        %v942 = vshrl.u32 683565275, %v941
        %v943 = vshll.u32 683565275, %v940
        %v944 = vshrl.u32 2475754826, %v941
        %v945 = vor.u32 %v943, %v944
        %v946 = vshll.u32 2475754826, %v940
        %v947 = vshrl.u32 2131351028, %v941
        %v948 = vor.u32 %v946, %v947
        %v949 = vshll.u32 2131351028, %v940
        %v950 = vshrl.u32 2102212464, %v941
        %v951 = vor.u32 %v949, %v950
        %v952 = vshll.u32 2102212464, %v940
        %v953 = vshrl.u32 920167782, %v941
        %v954 = vor.u32 %v952, %v953
        %v955 = vshll.u32 920167782, %v940
        %v956 = vshrl.u32 1326507024, %v941
        %v957 = vor.u32 %v955, %v956
        %vm958 = vcmp.lt.s32.totalorder %v939, 1
        %vm959 = vcmp.lt.s32.totalorder %v939, 2
        %vm960 = vcmp.lt.s32.totalorder %v939, 3
        %vm961 = vcmp.lt.s32.totalorder %v939, 4
        %v962 = vsel %vm958, %v942, %v945
        %v963 = vsel %vm961, %v951, 2102212464
        %v964 = vsel %vm960, %v948, %v963
        %v965 = vsel %vm959, %v962, %v964
        %v966 = vsel %vm958, %v945, %v948
        %v967 = vsel %vm961, %v954, 920167782
        %v968 = vsel %vm960, %v951, %v967
        %v969 = vsel %vm959, %v966, %v968
        %v970 = vsel %vm958, %v948, %v951
        %v971 = vsel %vm961, %v957, 1326507024
        %v972 = vsel %vm960, %v954, %v971
        %v973 = vsel %vm959, %v970, %v972
        %v974 = vshll.u32 %v934, 8
        %v975 = vmul.u32.u64.compose %v974, %v973
        %v976 = vextract.low.u32 %v975
        %v977 = vextract.high.u32 %v975
        %v978 = vmul.u32.u64.compose %v974, %v969
        %v979 = vextract.low.u32 %v978
        %v980 = vextract.high.u32 %v978
        %v981 = vmul.u32 %v974, %v965
        %v982 = vadd.s32 %v977, %v979
        %vm983 = vc.u32 %v977, %v979
        %v984 = vadd.s32 %v980, 1
        %v985 = vsel %vm983, %v984, %v980
        %v986 = vadd.s32 %v981, %v985
        %v987 = vadd.s32 %v986, 536870912
        %v988 = vshrl.u32 %v987, 30
        %v989 = vshll.u32 %v988, 30
        %v990 = vsub.s32 %v986, %v989
        %vm991 = vcmp.lt.s32.totalorder %v990, 0
        %v992 = vsub.s32 0, %v990
        %v993 = vsel %vm991, %v992, %v990
        %v994 = vclz %v993
        %v995 = vsub.s32 %v994, 2
        %vm996 = vcmp.gt.s32.totalorder 0, %v995
        %v997 = vsel %vm996, 0, %v995
        %v998 = vsub.s32 32, %v997
        %v999 = vshll.u32 %v990, %v997
        %v1000 = vshrl.u32 %v982, %v998
        %v1001 = vor.u32 %v999, %v1000
        %v1002 = vsub.s32 4294967266, %v997
        %v1003 = vadd.s32 %v1002, 127
        %v1004 = vshll.u32 %v1003, 23
        %v1005 = vor.u32 4788187, %v1004
        %v1006 = vand.u32 2147483647, %v1005
        %v1008 = vcvt.s32.f32 %v1001
        %v1009 = vmul.f32 %v1008, %v1006
        %v1010 = vxor.u32 %v1009, 2147483648
        %v1011 = vsel %vm928, %v1010, %v1009
        %v1012 = vsub.s32 4, %v988
        %v1013 = vsel %vm928, %v1012, %v988
        %v1014 = vsel %vm927, %v496, %v1011
        %v1015 = vsel %vm927, 0, %v1013
        %v1016 = vcosq.f32.pop %v1014
        %v1017 = vsinq.f32.pop %v1014
        %vm1018 = vweird.f32 %v496
        %v1019 = vadd.s32 %v1015, 3
        %v1020 = vand.u32 %v1019, 3
        %vm1021 = vcmp.lt.s32.totalorder %v1020, 2
        %vm1022 = vcmp.eq.s32.totalorder %v1020, 0
        %v1023 = vxor.u32 %v1017, 2147483648
        %v1024 = vsel %vm1022, %v1016, %v1023
        %vm1025 = vcmp.eq.s32.totalorder %v1020, 2
        %v1026 = vxor.u32 %v1016, 2147483648
        %v1027 = vsel %vm1025, %v1026, %v1017
        %v1028 = vsel %vm1021, %v1024, %v1027
        %v1029 = vsel %vm1018, nan, %v1028
        %v1030 = vand.u32 2147483647, %v499
        %vm1031 = vcmp.le.f32.partialorder %v1030, 0.7853982
        %vm1032 = vcmp.lt.s32.totalorder %v499, 0
        %v1033 = vand.u32 %v499, 2139095040
        %v1034 = vshrl.u32 %v1033, 23
        %v1035 = vsub.s32 %v1034, 127
        %v1036 = vand.u32 2147483647, %v499
        %v1037 = vand.u32 %v1036, 8388607
        %v1038 = vor.u32 %v1037, 8388608
        %v1039 = vsub.s32 0, %v1038
        %v1040 = vadd.s32 %v1035, 1
        %vm1041 = vcmp.gt.s32.totalorder %v1040, 0
        %v1042 = vsel %vm1041, %v1040, 0
        %v1043 = vshrl.u32 %v1042, 5
        %v1044 = vand.u32 %v1042, 31
        %v1045 = vsub.s32 32, %v1044
        %v1046 = vshrl.u32 683565275, %v1045
        %v1047 = vshll.u32 683565275, %v1044
        %v1048 = vshrl.u32 2475754826, %v1045
        %v1049 = vor.u32 %v1047, %v1048
        %v1050 = vshll.u32 2475754826, %v1044
        %v1051 = vshrl.u32 2131351028, %v1045
        %v1052 = vor.u32 %v1050, %v1051
        %v1053 = vshll.u32 2131351028, %v1044
        %v1054 = vshrl.u32 2102212464, %v1045
        %v1055 = vor.u32 %v1053, %v1054
        %v1056 = vshll.u32 2102212464, %v1044
        %v1057 = vshrl.u32 920167782, %v1045
        %v1058 = vor.u32 %v1056, %v1057
        %v1059 = vshll.u32 920167782, %v1044
        %v1060 = vshrl.u32 1326507024, %v1045
        %v1061 = vor.u32 %v1059, %v1060
        %vm1062 = vcmp.lt.s32.totalorder %v1043, 1
        %vm1063 = vcmp.lt.s32.totalorder %v1043, 2
        %vm1064 = vcmp.lt.s32.totalorder %v1043, 3
        %vm1065 = vcmp.lt.s32.totalorder %v1043, 4
        %v1066 = vsel %vm1062, %v1046, %v1049
        %v1067 = vsel %vm1065, %v1055, 2102212464
        %v1068 = vsel %vm1064, %v1052, %v1067
        %v1069 = vsel %vm1063, %v1066, %v1068
        %v1070 = vsel %vm1062, %v1049, %v1052
        %v1071 = vsel %vm1065, %v1058, 920167782
        %v1072 = vsel %vm1064, %v1055, %v1071
        %v1073 = vsel %vm1063, %v1070, %v1072
        %v1074 = vsel %vm1062, %v1052, %v1055
        %v1075 = vsel %vm1065, %v1061, 1326507024
        %v1076 = vsel %vm1064, %v1058, %v1075
        %v1077 = vsel %vm1063, %v1074, %v1076
        %v1078 = vshll.u32 %v1038, 8
        %v1079 = vmul.u32.u64.compose %v1078, %v1077
        %v1080 = vextract.low.u32 %v1079
        %v1081 = vextract.high.u32 %v1079
        %v1082 = vmul.u32.u64.compose %v1078, %v1073
        %v1083 = vextract.low.u32 %v1082
        %v1084 = vextract.high.u32 %v1082
        %v1085 = vmul.u32 %v1078, %v1069
        %v1086 = vadd.s32 %v1081, %v1083
        %vm1087 = vc.u32 %v1081, %v1083
        %v1088 = vadd.s32 %v1084, 1
        %v1089 = vsel %vm1087, %v1088, %v1084
        %v1090 = vadd.s32 %v1085, %v1089
        %v1091 = vadd.s32 %v1090, 536870912
        %v1092 = vshrl.u32 %v1091, 30
        %v1093 = vshll.u32 %v1092, 30
        %v1094 = vsub.s32 %v1090, %v1093
        %vm1095 = vcmp.lt.s32.totalorder %v1094, 0
        %v1096 = vsub.s32 0, %v1094
        %v1097 = vsel %vm1095, %v1096, %v1094
        %v1098 = vclz %v1097
        %v1099 = vsub.s32 %v1098, 2
        %vm1100 = vcmp.gt.s32.totalorder 0, %v1099
        %v1101 = vsel %vm1100, 0, %v1099
        %v1102 = vsub.s32 32, %v1101
        %v1103 = vshll.u32 %v1094, %v1101
        %v1104 = vshrl.u32 %v1086, %v1102
        %v1105 = vor.u32 %v1103, %v1104
        %v1106 = vsub.s32 4294967266, %v1101
        %v1107 = vadd.s32 %v1106, 127
        %v1108 = vshll.u32 %v1107, 23
        %v1109 = vor.u32 4788187, %v1108
        %v1110 = vand.u32 2147483647, %v1109
        %v1112 = vcvt.s32.f32 %v1105
        %v1113 = vmul.f32 %v1112, %v1110
        %v1114 = vxor.u32 %v1113, 2147483648
        %v1115 = vsel %vm1032, %v1114, %v1113
        %v1116 = vsub.s32 4, %v1092
        %v1117 = vsel %vm1032, %v1116, %v1092
        %v1118 = vsel %vm1031, %v499, %v1115
        %v1119 = vsel %vm1031, 0, %v1117
        %v1120 = vcosq.f32.pop %v1118
        %v1121 = vsinq.f32.pop %v1118
        %vm1122 = vweird.f32 %v499
        %v1123 = vadd.s32 %v1119, 3
        %v1124 = vand.u32 %v1123, 3
        %vm1125 = vcmp.lt.s32.totalorder %v1124, 2
        %vm1126 = vcmp.eq.s32.totalorder %v1124, 0
        %v1127 = vxor.u32 %v1121, 2147483648
        %v1128 = vsel %vm1126, %v1120, %v1127
        %vm1129 = vcmp.eq.s32.totalorder %v1124, 2
        %v1130 = vxor.u32 %v1120, 2147483648
        %v1131 = vsel %vm1129, %v1130, %v1121
        %v1132 = vsel %vm1125, %v1128, %v1131
        %v1133 = vsel %vm1122, nan, %v1132
        %v1134 = vand.u32 2147483647, %v504
        %vm1135 = vcmp.le.f32.partialorder %v1134, 0.7853982
        %vm1136 = vcmp.lt.s32.totalorder %v504, 0
        %v1137 = vand.u32 %v504, 2139095040
        %v1138 = vshrl.u32 %v1137, 23
        %v1139 = vsub.s32 %v1138, 127
        %v1140 = vand.u32 2147483647, %v504
        %v1141 = vand.u32 %v1140, 8388607
        %v1142 = vor.u32 %v1141, 8388608
        %v1143 = vsub.s32 0, %v1142
        %v1144 = vadd.s32 %v1139, 1
        %vm1145 = vcmp.gt.s32.totalorder %v1144, 0
        %v1146 = vsel %vm1145, %v1144, 0
        %v1147 = vshrl.u32 %v1146, 5
        %v1148 = vand.u32 %v1146, 31
        %v1149 = vsub.s32 32, %v1148
        %v1150 = vshrl.u32 683565275, %v1149
        %v1151 = vshll.u32 683565275, %v1148
        %v1152 = vshrl.u32 2475754826, %v1149
        %v1153 = vor.u32 %v1151, %v1152
        %v1154 = vshll.u32 2475754826, %v1148
        %v1155 = vshrl.u32 2131351028, %v1149
        %v1156 = vor.u32 %v1154, %v1155
        %v1157 = vshll.u32 2131351028, %v1148
        %v1158 = vshrl.u32 2102212464, %v1149
        %v1159 = vor.u32 %v1157, %v1158
        %v1160 = vshll.u32 2102212464, %v1148
        %v1161 = vshrl.u32 920167782, %v1149
        %v1162 = vor.u32 %v1160, %v1161
        %v1163 = vshll.u32 920167782, %v1148
        %v1164 = vshrl.u32 1326507024, %v1149
        %v1165 = vor.u32 %v1163, %v1164
        %vm1166 = vcmp.lt.s32.totalorder %v1147, 1
        %vm1167 = vcmp.lt.s32.totalorder %v1147, 2
        %vm1168 = vcmp.lt.s32.totalorder %v1147, 3
        %vm1169 = vcmp.lt.s32.totalorder %v1147, 4
        %v1170 = vsel %vm1166, %v1150, %v1153
        %v1171 = vsel %vm1169, %v1159, 2102212464
        %v1172 = vsel %vm1168, %v1156, %v1171
        %v1173 = vsel %vm1167, %v1170, %v1172
        %v1174 = vsel %vm1166, %v1153, %v1156
        %v1175 = vsel %vm1169, %v1162, 920167782
        %v1176 = vsel %vm1168, %v1159, %v1175
        %v1177 = vsel %vm1167, %v1174, %v1176
        %v1178 = vsel %vm1166, %v1156, %v1159
        %v1179 = vsel %vm1169, %v1165, 1326507024
        %v1180 = vsel %vm1168, %v1162, %v1179
        %v1181 = vsel %vm1167, %v1178, %v1180
        %v1182 = vshll.u32 %v1142, 8
        %v1183 = vmul.u32.u64.compose %v1182, %v1181
        %v1184 = vextract.low.u32 %v1183
        %v1185 = vextract.high.u32 %v1183
        %v1186 = vmul.u32.u64.compose %v1182, %v1177
        %v1187 = vextract.low.u32 %v1186
        %v1188 = vextract.high.u32 %v1186
        %v1189 = vmul.u32 %v1182, %v1173
        %v1190 = vadd.s32 %v1185, %v1187
        %vm1191 = vc.u32 %v1185, %v1187
        %v1192 = vadd.s32 %v1188, 1
        %v1193 = vsel %vm1191, %v1192, %v1188
        %v1194 = vadd.s32 %v1189, %v1193
        %v1195 = vadd.s32 %v1194, 536870912
        %v1196 = vshrl.u32 %v1195, 30
        %v1197 = vshll.u32 %v1196, 30
        %v1198 = vsub.s32 %v1194, %v1197
        %vm1199 = vcmp.lt.s32.totalorder %v1198, 0
        %v1200 = vsub.s32 0, %v1198
        %v1201 = vsel %vm1199, %v1200, %v1198
        %v1202 = vclz %v1201
        %v1203 = vsub.s32 %v1202, 2
        %vm1204 = vcmp.gt.s32.totalorder 0, %v1203
        %v1205 = vsel %vm1204, 0, %v1203
        %v1206 = vsub.s32 32, %v1205
        %v1207 = vshll.u32 %v1198, %v1205
        %v1208 = vshrl.u32 %v1190, %v1206
        %v1209 = vor.u32 %v1207, %v1208
        %v1210 = vsub.s32 4294967266, %v1205
        %v1211 = vadd.s32 %v1210, 127
        %v1212 = vshll.u32 %v1211, 23
        %v1213 = vor.u32 4788187, %v1212
        %v1214 = vand.u32 2147483647, %v1213
        %v1216 = vcvt.s32.f32 %v1209
        %v1217 = vmul.f32 %v1216, %v1214
        %v1218 = vxor.u32 %v1217, 2147483648
        %v1219 = vsel %vm1136, %v1218, %v1217
        %v1220 = vsub.s32 4, %v1196
        %v1221 = vsel %vm1136, %v1220, %v1196
        %v1222 = vsel %vm1135, %v504, %v1219
        %v1223 = vsel %vm1135, 0, %v1221
        %v1224 = vcosq.f32.pop %v1222
        %v1225 = vsinq.f32.pop %v1222
        %vm1226 = vweird.f32 %v504
        %v1227 = vadd.s32 %v1223, 3
        %v1228 = vand.u32 %v1227, 3
        %vm1229 = vcmp.lt.s32.totalorder %v1228, 2
        %vm1230 = vcmp.eq.s32.totalorder %v1228, 0
        %v1231 = vxor.u32 %v1225, 2147483648
        %v1232 = vsel %vm1230, %v1224, %v1231
        %vm1233 = vcmp.eq.s32.totalorder %v1228, 2
        %v1234 = vxor.u32 %v1224, 2147483648
        %v1235 = vsel %vm1233, %v1234, %v1225
        %v1236 = vsel %vm1229, %v1232, %v1235
        %v1237 = vsel %vm1226, nan, %v1236
        %v1238 = vand.u32 2147483647, %v507
        %vm1239 = vcmp.le.f32.partialorder %v1238, 0.7853982
        %vm1240 = vcmp.lt.s32.totalorder %v507, 0
        %v1241 = vand.u32 %v507, 2139095040
        %v1242 = vshrl.u32 %v1241, 23
        %v1243 = vsub.s32 %v1242, 127
        %v1244 = vand.u32 2147483647, %v507
        %v1245 = vand.u32 %v1244, 8388607
        %v1246 = vor.u32 %v1245, 8388608
        %v1247 = vsub.s32 0, %v1246
        %v1248 = vadd.s32 %v1243, 1
        %vm1249 = vcmp.gt.s32.totalorder %v1248, 0
        %v1250 = vsel %vm1249, %v1248, 0
        %v1251 = vshrl.u32 %v1250, 5
        %v1252 = vand.u32 %v1250, 31
        %v1253 = vsub.s32 32, %v1252
        %v1254 = vshrl.u32 683565275, %v1253
        %v1255 = vshll.u32 683565275, %v1252
        %v1256 = vshrl.u32 2475754826, %v1253
        %v1257 = vor.u32 %v1255, %v1256
        %v1258 = vshll.u32 2475754826, %v1252
        %v1259 = vshrl.u32 2131351028, %v1253
        %v1260 = vor.u32 %v1258, %v1259
        %v1261 = vshll.u32 2131351028, %v1252
        %v1262 = vshrl.u32 2102212464, %v1253
        %v1263 = vor.u32 %v1261, %v1262
        %v1264 = vshll.u32 2102212464, %v1252
        %v1265 = vshrl.u32 920167782, %v1253
        %v1266 = vor.u32 %v1264, %v1265
        %v1267 = vshll.u32 920167782, %v1252
        %v1268 = vshrl.u32 1326507024, %v1253
        %v1269 = vor.u32 %v1267, %v1268
        %vm1270 = vcmp.lt.s32.totalorder %v1251, 1
        %vm1271 = vcmp.lt.s32.totalorder %v1251, 2
        %vm1272 = vcmp.lt.s32.totalorder %v1251, 3
        %vm1273 = vcmp.lt.s32.totalorder %v1251, 4
        %v1274 = vsel %vm1270, %v1254, %v1257
        %v1275 = vsel %vm1273, %v1263, 2102212464
        %v1276 = vsel %vm1272, %v1260, %v1275
        %v1277 = vsel %vm1271, %v1274, %v1276
        %v1278 = vsel %vm1270, %v1257, %v1260
        %v1279 = vsel %vm1273, %v1266, 920167782
        %v1280 = vsel %vm1272, %v1263, %v1279
        %v1281 = vsel %vm1271, %v1278, %v1280
        %v1282 = vsel %vm1270, %v1260, %v1263
        %v1283 = vsel %vm1273, %v1269, 1326507024
        %v1284 = vsel %vm1272, %v1266, %v1283
        %v1285 = vsel %vm1271, %v1282, %v1284
        %v1286 = vshll.u32 %v1246, 8
        %v1287 = vmul.u32.u64.compose %v1286, %v1285
        %v1288 = vextract.low.u32 %v1287
        %v1289 = vextract.high.u32 %v1287
        %v1290 = vmul.u32.u64.compose %v1286, %v1281
        %v1291 = vextract.low.u32 %v1290
        %v1292 = vextract.high.u32 %v1290
        %v1293 = vmul.u32 %v1286, %v1277
        %v1294 = vadd.s32 %v1289, %v1291
        %vm1295 = vc.u32 %v1289, %v1291
        %v1296 = vadd.s32 %v1292, 1
        %v1297 = vsel %vm1295, %v1296, %v1292
        %v1298 = vadd.s32 %v1293, %v1297
        %v1299 = vadd.s32 %v1298, 536870912
        %v1300 = vshrl.u32 %v1299, 30
        %v1301 = vshll.u32 %v1300, 30
        %v1302 = vsub.s32 %v1298, %v1301
        %vm1303 = vcmp.lt.s32.totalorder %v1302, 0
        %v1304 = vsub.s32 0, %v1302
        %v1305 = vsel %vm1303, %v1304, %v1302
        %v1306 = vclz %v1305
        %v1307 = vsub.s32 %v1306, 2
        %vm1308 = vcmp.gt.s32.totalorder 0, %v1307
        %v1309 = vsel %vm1308, 0, %v1307
        %v1310 = vsub.s32 32, %v1309
        %v1311 = vshll.u32 %v1302, %v1309
        %v1312 = vshrl.u32 %v1294, %v1310
        %v1313 = vor.u32 %v1311, %v1312
        %v1314 = vsub.s32 4294967266, %v1309
        %v1315 = vadd.s32 %v1314, 127
        %v1316 = vshll.u32 %v1315, 23
        %v1317 = vor.u32 4788187, %v1316
        %v1318 = vand.u32 2147483647, %v1317
        %v1320 = vcvt.s32.f32 %v1313
        %v1321 = vmul.f32 %v1320, %v1318
        %v1322 = vxor.u32 %v1321, 2147483648
        %v1323 = vsel %vm1240, %v1322, %v1321
        %v1324 = vsub.s32 4, %v1300
        %v1325 = vsel %vm1240, %v1324, %v1300
        %v1326 = vsel %vm1239, %v507, %v1323
        %v1327 = vsel %vm1239, 0, %v1325
        %v1328 = vcosq.f32.pop %v1326
        %v1329 = vsinq.f32.pop %v1326
        %vm1330 = vweird.f32 %v507
        %v1331 = vadd.s32 %v1327, 3
        %v1332 = vand.u32 %v1331, 3
        %vm1333 = vcmp.lt.s32.totalorder %v1332, 2
        %vm1334 = vcmp.eq.s32.totalorder %v1332, 0
        %v1335 = vxor.u32 %v1329, 2147483648
        %v1336 = vsel %vm1334, %v1328, %v1335
        %vm1337 = vcmp.eq.s32.totalorder %v1332, 2
        %v1338 = vxor.u32 %v1328, 2147483648
        %v1339 = vsel %vm1337, %v1338, %v1329
        %v1340 = vsel %vm1333, %v1336, %v1339
        %v1341 = vsel %vm1330, nan, %v1340
        %v1342 = vpack.c.bf16 %v717, %v613
        %v1343 = vpack.c.bf16 %v925, %v821
        %v1344 = vpack.c.bf16 %v1133, %v1029
        %v1345 = vpack.c.bf16 %v1341, %v1237
        %v1346 = vand.u32 2147483647, %v480
        %vm1347 = vcmp.le.f32.partialorder %v1346, 0.7853982
        %vm1348 = vcmp.lt.s32.totalorder %v480, 0
        %v1349 = vand.u32 %v480, 2139095040
        %v1350 = vshrl.u32 %v1349, 23
        %v1351 = vsub.s32 %v1350, 127
        %v1352 = vand.u32 2147483647, %v480
        %v1353 = vand.u32 %v1352, 8388607
        %v1354 = vor.u32 %v1353, 8388608
        %v1355 = vsub.s32 0, %v1354
        %v1356 = vadd.s32 %v1351, 1
        %vm1357 = vcmp.gt.s32.totalorder %v1356, 0
        %v1358 = vsel %vm1357, %v1356, 0
        %v1359 = vshrl.u32 %v1358, 5
        %v1360 = vand.u32 %v1358, 31
        %v1361 = vsub.s32 32, %v1360
        %v1362 = vshrl.u32 683565275, %v1361
        %v1363 = vshll.u32 683565275, %v1360
        %v1364 = vshrl.u32 2475754826, %v1361
        %v1365 = vor.u32 %v1363, %v1364
        %v1366 = vshll.u32 2475754826, %v1360
        %v1367 = vshrl.u32 2131351028, %v1361
        %v1368 = vor.u32 %v1366, %v1367
        %v1369 = vshll.u32 2131351028, %v1360
        %v1370 = vshrl.u32 2102212464, %v1361
        %v1371 = vor.u32 %v1369, %v1370
        %v1372 = vshll.u32 2102212464, %v1360
        %v1373 = vshrl.u32 920167782, %v1361
        %v1374 = vor.u32 %v1372, %v1373
        %v1375 = vshll.u32 920167782, %v1360
        %v1376 = vshrl.u32 1326507024, %v1361
        %v1377 = vor.u32 %v1375, %v1376
        %vm1378 = vcmp.lt.s32.totalorder %v1359, 1
        %vm1379 = vcmp.lt.s32.totalorder %v1359, 2
        %vm1380 = vcmp.lt.s32.totalorder %v1359, 3
        %vm1381 = vcmp.lt.s32.totalorder %v1359, 4
        %v1382 = vsel %vm1378, %v1362, %v1365
        %v1383 = vsel %vm1381, %v1371, 2102212464
        %v1384 = vsel %vm1380, %v1368, %v1383
        %v1385 = vsel %vm1379, %v1382, %v1384
        %v1386 = vsel %vm1378, %v1365, %v1368
        %v1387 = vsel %vm1381, %v1374, 920167782
        %v1388 = vsel %vm1380, %v1371, %v1387
        %v1389 = vsel %vm1379, %v1386, %v1388
        %v1390 = vsel %vm1378, %v1368, %v1371
        %v1391 = vsel %vm1381, %v1377, 1326507024
        %v1392 = vsel %vm1380, %v1374, %v1391
        %v1393 = vsel %vm1379, %v1390, %v1392
        %v1394 = vshll.u32 %v1354, 8
        %v1395 = vmul.u32.u64.compose %v1394, %v1393
        %v1396 = vextract.low.u32 %v1395
        %v1397 = vextract.high.u32 %v1395
        %v1398 = vmul.u32.u64.compose %v1394, %v1389
        %v1399 = vextract.low.u32 %v1398
        %v1400 = vextract.high.u32 %v1398
        %v1401 = vmul.u32 %v1394, %v1385
        %v1402 = vadd.s32 %v1397, %v1399
        %vm1403 = vc.u32 %v1397, %v1399
        %v1404 = vadd.s32 %v1400, 1
        %v1405 = vsel %vm1403, %v1404, %v1400
        %v1406 = vadd.s32 %v1401, %v1405
        %v1407 = vadd.s32 %v1406, 536870912
        %v1408 = vshrl.u32 %v1407, 30
        %v1409 = vshll.u32 %v1408, 30
        %v1410 = vsub.s32 %v1406, %v1409
        %vm1411 = vcmp.lt.s32.totalorder %v1410, 0
        %v1412 = vsub.s32 0, %v1410
        %v1413 = vsel %vm1411, %v1412, %v1410
        %v1414 = vclz %v1413
        %v1415 = vsub.s32 %v1414, 2
        %vm1416 = vcmp.gt.s32.totalorder 0, %v1415
        %v1417 = vsel %vm1416, 0, %v1415
        %v1418 = vsub.s32 32, %v1417
        %v1419 = vshll.u32 %v1410, %v1417
        %v1420 = vshrl.u32 %v1402, %v1418
        %v1421 = vor.u32 %v1419, %v1420
        %v1422 = vsub.s32 4294967266, %v1417
        %v1423 = vadd.s32 %v1422, 127
        %v1424 = vshll.u32 %v1423, 23
        %v1425 = vor.u32 4788187, %v1424
        %v1426 = vand.u32 2147483647, %v1425
        %v1428 = vcvt.s32.f32 %v1421
        %v1429 = vmul.f32 %v1428, %v1426
        %v1430 = vxor.u32 %v1429, 2147483648
        %v1431 = vsel %vm1348, %v1430, %v1429
        %v1432 = vsub.s32 4, %v1408
        %v1433 = vsel %vm1348, %v1432, %v1408
        %v1434 = vsel %vm1347, %v480, %v1431
        %v1435 = vsel %vm1347, 0, %v1433
        %v1436 = vcosq.f32.pop %v1434
        %v1437 = vsinq.f32.pop %v1434
        %vm1438 = vweird.f32 %v480
        %v1439 = vand.u32 %v1435, 3
        %vm1440 = vcmp.lt.s32.totalorder %v1439, 2
        %vm1441 = vcmp.eq.s32.totalorder %v1439, 0
        %v1442 = vxor.u32 %v1437, 2147483648
        %v1443 = vsel %vm1441, %v1436, %v1442
        %vm1444 = vcmp.eq.s32.totalorder %v1439, 2
        %v1445 = vxor.u32 %v1436, 2147483648
        %v1446 = vsel %vm1444, %v1445, %v1437
        %v1447 = vsel %vm1440, %v1443, %v1446
        %v1448 = vsel %vm1438, nan, %v1447
        %v1449 = vand.u32 2147483647, %v483
        %vm1450 = vcmp.le.f32.partialorder %v1449, 0.7853982
        %vm1451 = vcmp.lt.s32.totalorder %v483, 0
        %v1452 = vand.u32 %v483, 2139095040
        %v1453 = vshrl.u32 %v1452, 23
        %v1454 = vsub.s32 %v1453, 127
        %v1455 = vand.u32 2147483647, %v483
        %v1456 = vand.u32 %v1455, 8388607
        %v1457 = vor.u32 %v1456, 8388608
        %v1458 = vsub.s32 0, %v1457
        %v1459 = vadd.s32 %v1454, 1
        %vm1460 = vcmp.gt.s32.totalorder %v1459, 0
        %v1461 = vsel %vm1460, %v1459, 0
        %v1462 = vshrl.u32 %v1461, 5
        %v1463 = vand.u32 %v1461, 31
        %v1464 = vsub.s32 32, %v1463
        %v1465 = vshrl.u32 683565275, %v1464
        %v1466 = vshll.u32 683565275, %v1463
        %v1467 = vshrl.u32 2475754826, %v1464
        %v1468 = vor.u32 %v1466, %v1467
        %v1469 = vshll.u32 2475754826, %v1463
        %v1470 = vshrl.u32 2131351028, %v1464
        %v1471 = vor.u32 %v1469, %v1470
        %v1472 = vshll.u32 2131351028, %v1463
        %v1473 = vshrl.u32 2102212464, %v1464
        %v1474 = vor.u32 %v1472, %v1473
        %v1475 = vshll.u32 2102212464, %v1463
        %v1476 = vshrl.u32 920167782, %v1464
        %v1477 = vor.u32 %v1475, %v1476
        %v1478 = vshll.u32 920167782, %v1463
        %v1479 = vshrl.u32 1326507024, %v1464
        %v1480 = vor.u32 %v1478, %v1479
        %vm1481 = vcmp.lt.s32.totalorder %v1462, 1
        %vm1482 = vcmp.lt.s32.totalorder %v1462, 2
        %vm1483 = vcmp.lt.s32.totalorder %v1462, 3
        %vm1484 = vcmp.lt.s32.totalorder %v1462, 4
        %v1485 = vsel %vm1481, %v1465, %v1468
        %v1486 = vsel %vm1484, %v1474, 2102212464
        %v1487 = vsel %vm1483, %v1471, %v1486
        %v1488 = vsel %vm1482, %v1485, %v1487
        %v1489 = vsel %vm1481, %v1468, %v1471
        %v1490 = vsel %vm1484, %v1477, 920167782
        %v1491 = vsel %vm1483, %v1474, %v1490
        %v1492 = vsel %vm1482, %v1489, %v1491
        %v1493 = vsel %vm1481, %v1471, %v1474
        %v1494 = vsel %vm1484, %v1480, 1326507024
        %v1495 = vsel %vm1483, %v1477, %v1494
        %v1496 = vsel %vm1482, %v1493, %v1495
        %v1497 = vshll.u32 %v1457, 8
        %v1498 = vmul.u32.u64.compose %v1497, %v1496
        %v1499 = vextract.low.u32 %v1498
        %v1500 = vextract.high.u32 %v1498
        %v1501 = vmul.u32.u64.compose %v1497, %v1492
        %v1502 = vextract.low.u32 %v1501
        %v1503 = vextract.high.u32 %v1501
        %v1504 = vmul.u32 %v1497, %v1488
        %v1505 = vadd.s32 %v1500, %v1502
        %vm1506 = vc.u32 %v1500, %v1502
        %v1507 = vadd.s32 %v1503, 1
        %v1508 = vsel %vm1506, %v1507, %v1503
        %v1509 = vadd.s32 %v1504, %v1508
        %v1510 = vadd.s32 %v1509, 536870912
        %v1511 = vshrl.u32 %v1510, 30
        %v1512 = vshll.u32 %v1511, 30
        %v1513 = vsub.s32 %v1509, %v1512
        %vm1514 = vcmp.lt.s32.totalorder %v1513, 0
        %v1515 = vsub.s32 0, %v1513
        %v1516 = vsel %vm1514, %v1515, %v1513
        %v1517 = vclz %v1516
        %v1518 = vsub.s32 %v1517, 2
        %vm1519 = vcmp.gt.s32.totalorder 0, %v1518
        %v1520 = vsel %vm1519, 0, %v1518
        %v1521 = vsub.s32 32, %v1520
        %v1522 = vshll.u32 %v1513, %v1520
        %v1523 = vshrl.u32 %v1505, %v1521
        %v1524 = vor.u32 %v1522, %v1523
        %v1525 = vsub.s32 4294967266, %v1520
        %v1526 = vadd.s32 %v1525, 127
        %v1527 = vshll.u32 %v1526, 23
        %v1528 = vor.u32 4788187, %v1527
        %v1529 = vand.u32 2147483647, %v1528
        %v1531 = vcvt.s32.f32 %v1524
        %v1532 = vmul.f32 %v1531, %v1529
        %v1533 = vxor.u32 %v1532, 2147483648
        %v1534 = vsel %vm1451, %v1533, %v1532
        %v1535 = vsub.s32 4, %v1511
        %v1536 = vsel %vm1451, %v1535, %v1511
        %v1537 = vsel %vm1450, %v483, %v1534
        %v1538 = vsel %vm1450, 0, %v1536
        %v1539 = vcosq.f32.pop %v1537
        %v1540 = vsinq.f32.pop %v1537
        %vm1541 = vweird.f32 %v483
        %v1542 = vand.u32 %v1538, 3
        %vm1543 = vcmp.lt.s32.totalorder %v1542, 2
        %vm1544 = vcmp.eq.s32.totalorder %v1542, 0
        %v1545 = vxor.u32 %v1540, 2147483648
        %v1546 = vsel %vm1544, %v1539, %v1545
        %vm1547 = vcmp.eq.s32.totalorder %v1542, 2
        %v1548 = vxor.u32 %v1539, 2147483648
        %v1549 = vsel %vm1547, %v1548, %v1540
        %v1550 = vsel %vm1543, %v1546, %v1549
        %v1551 = vsel %vm1541, nan, %v1550
        %v1552 = vand.u32 2147483647, %v488
        %vm1553 = vcmp.le.f32.partialorder %v1552, 0.7853982
        %vm1554 = vcmp.lt.s32.totalorder %v488, 0
        %v1555 = vand.u32 %v488, 2139095040
        %v1556 = vshrl.u32 %v1555, 23
        %v1557 = vsub.s32 %v1556, 127
        %v1558 = vand.u32 2147483647, %v488
        %v1559 = vand.u32 %v1558, 8388607
        %v1560 = vor.u32 %v1559, 8388608
        %v1561 = vsub.s32 0, %v1560
        %v1562 = vadd.s32 %v1557, 1
        %vm1563 = vcmp.gt.s32.totalorder %v1562, 0
        %v1564 = vsel %vm1563, %v1562, 0
        %v1565 = vshrl.u32 %v1564, 5
        %v1566 = vand.u32 %v1564, 31
        %v1567 = vsub.s32 32, %v1566
        %v1568 = vshrl.u32 683565275, %v1567
        %v1569 = vshll.u32 683565275, %v1566
        %v1570 = vshrl.u32 2475754826, %v1567
        %v1571 = vor.u32 %v1569, %v1570
        %v1572 = vshll.u32 2475754826, %v1566
        %v1573 = vshrl.u32 2131351028, %v1567
        %v1574 = vor.u32 %v1572, %v1573
        %v1575 = vshll.u32 2131351028, %v1566
        %v1576 = vshrl.u32 2102212464, %v1567
        %v1577 = vor.u32 %v1575, %v1576
        %v1578 = vshll.u32 2102212464, %v1566
        %v1579 = vshrl.u32 920167782, %v1567
        %v1580 = vor.u32 %v1578, %v1579
        %v1581 = vshll.u32 920167782, %v1566
        %v1582 = vshrl.u32 1326507024, %v1567
        %v1583 = vor.u32 %v1581, %v1582
        %vm1584 = vcmp.lt.s32.totalorder %v1565, 1
        %vm1585 = vcmp.lt.s32.totalorder %v1565, 2
        %vm1586 = vcmp.lt.s32.totalorder %v1565, 3
        %vm1587 = vcmp.lt.s32.totalorder %v1565, 4
        %v1588 = vsel %vm1584, %v1568, %v1571
        %v1589 = vsel %vm1587, %v1577, 2102212464
        %v1590 = vsel %vm1586, %v1574, %v1589
        %v1591 = vsel %vm1585, %v1588, %v1590
        %v1592 = vsel %vm1584, %v1571, %v1574
        %v1593 = vsel %vm1587, %v1580, 920167782
        %v1594 = vsel %vm1586, %v1577, %v1593
        %v1595 = vsel %vm1585, %v1592, %v1594
        %v1596 = vsel %vm1584, %v1574, %v1577
        %v1597 = vsel %vm1587, %v1583, 1326507024
        %v1598 = vsel %vm1586, %v1580, %v1597
        %v1599 = vsel %vm1585, %v1596, %v1598
        %v1600 = vshll.u32 %v1560, 8
        %v1601 = vmul.u32.u64.compose %v1600, %v1599
        %v1602 = vextract.low.u32 %v1601
        %v1603 = vextract.high.u32 %v1601
        %v1604 = vmul.u32.u64.compose %v1600, %v1595
        %v1605 = vextract.low.u32 %v1604
        %v1606 = vextract.high.u32 %v1604
        %v1607 = vmul.u32 %v1600, %v1591
        %v1608 = vadd.s32 %v1603, %v1605
        %vm1609 = vc.u32 %v1603, %v1605
        %v1610 = vadd.s32 %v1606, 1
        %v1611 = vsel %vm1609, %v1610, %v1606
        %v1612 = vadd.s32 %v1607, %v1611
        %v1613 = vadd.s32 %v1612, 536870912
        %v1614 = vshrl.u32 %v1613, 30
        %v1615 = vshll.u32 %v1614, 30
        %v1616 = vsub.s32 %v1612, %v1615
        %vm1617 = vcmp.lt.s32.totalorder %v1616, 0
        %v1618 = vsub.s32 0, %v1616
        %v1619 = vsel %vm1617, %v1618, %v1616
        %v1620 = vclz %v1619
        %v1621 = vsub.s32 %v1620, 2
        %vm1622 = vcmp.gt.s32.totalorder 0, %v1621
        %v1623 = vsel %vm1622, 0, %v1621
        %v1624 = vsub.s32 32, %v1623
        %v1625 = vshll.u32 %v1616, %v1623
        %v1626 = vshrl.u32 %v1608, %v1624
        %v1627 = vor.u32 %v1625, %v1626
        %v1628 = vsub.s32 4294967266, %v1623
        %v1629 = vadd.s32 %v1628, 127
        %v1630 = vshll.u32 %v1629, 23
        %v1631 = vor.u32 4788187, %v1630
        %v1632 = vand.u32 2147483647, %v1631
        %v1634 = vcvt.s32.f32 %v1627
        %v1635 = vmul.f32 %v1634, %v1632
        %v1636 = vxor.u32 %v1635, 2147483648
        %v1637 = vsel %vm1554, %v1636, %v1635
        %v1638 = vsub.s32 4, %v1614
        %v1639 = vsel %vm1554, %v1638, %v1614
        %v1640 = vsel %vm1553, %v488, %v1637
        %v1641 = vsel %vm1553, 0, %v1639
        %v1642 = vcosq.f32.pop %v1640
        %v1643 = vsinq.f32.pop %v1640
        %vm1644 = vweird.f32 %v488
        %v1645 = vand.u32 %v1641, 3
        %vm1646 = vcmp.lt.s32.totalorder %v1645, 2
        %vm1647 = vcmp.eq.s32.totalorder %v1645, 0
        %v1648 = vxor.u32 %v1643, 2147483648
        %v1649 = vsel %vm1647, %v1642, %v1648
        %vm1650 = vcmp.eq.s32.totalorder %v1645, 2
        %v1651 = vxor.u32 %v1642, 2147483648
        %v1652 = vsel %vm1650, %v1651, %v1643
        %v1653 = vsel %vm1646, %v1649, %v1652
        %v1654 = vsel %vm1644, nan, %v1653
        %v1655 = vand.u32 2147483647, %v491
        %vm1656 = vcmp.le.f32.partialorder %v1655, 0.7853982
        %vm1657 = vcmp.lt.s32.totalorder %v491, 0
        %v1658 = vand.u32 %v491, 2139095040
        %v1659 = vshrl.u32 %v1658, 23
        %v1660 = vsub.s32 %v1659, 127
        %v1661 = vand.u32 2147483647, %v491
        %v1662 = vand.u32 %v1661, 8388607
        %v1663 = vor.u32 %v1662, 8388608
        %v1664 = vsub.s32 0, %v1663
        %v1665 = vadd.s32 %v1660, 1
        %vm1666 = vcmp.gt.s32.totalorder %v1665, 0
        %v1667 = vsel %vm1666, %v1665, 0
        %v1668 = vshrl.u32 %v1667, 5
        %v1669 = vand.u32 %v1667, 31
        %v1670 = vsub.s32 32, %v1669
        %v1671 = vshrl.u32 683565275, %v1670
        %v1672 = vshll.u32 683565275, %v1669
        %v1673 = vshrl.u32 2475754826, %v1670
        %v1674 = vor.u32 %v1672, %v1673
        %v1675 = vshll.u32 2475754826, %v1669
        %v1676 = vshrl.u32 2131351028, %v1670
        %v1677 = vor.u32 %v1675, %v1676
        %v1678 = vshll.u32 2131351028, %v1669
        %v1679 = vshrl.u32 2102212464, %v1670
        %v1680 = vor.u32 %v1678, %v1679
        %v1681 = vshll.u32 2102212464, %v1669
        %v1682 = vshrl.u32 920167782, %v1670
        %v1683 = vor.u32 %v1681, %v1682
        %v1684 = vshll.u32 920167782, %v1669
        %v1685 = vshrl.u32 1326507024, %v1670
        %v1686 = vor.u32 %v1684, %v1685
        %vm1687 = vcmp.lt.s32.totalorder %v1668, 1
        %vm1688 = vcmp.lt.s32.totalorder %v1668, 2
        %vm1689 = vcmp.lt.s32.totalorder %v1668, 3
        %vm1690 = vcmp.lt.s32.totalorder %v1668, 4
        %v1691 = vsel %vm1687, %v1671, %v1674
        %v1692 = vsel %vm1690, %v1680, 2102212464
        %v1693 = vsel %vm1689, %v1677, %v1692
        %v1694 = vsel %vm1688, %v1691, %v1693
        %v1695 = vsel %vm1687, %v1674, %v1677
        %v1696 = vsel %vm1690, %v1683, 920167782
        %v1697 = vsel %vm1689, %v1680, %v1696
        %v1698 = vsel %vm1688, %v1695, %v1697
        %v1699 = vsel %vm1687, %v1677, %v1680
        %v1700 = vsel %vm1690, %v1686, 1326507024
        %v1701 = vsel %vm1689, %v1683, %v1700
        %v1702 = vsel %vm1688, %v1699, %v1701
        %v1703 = vshll.u32 %v1663, 8
        %v1704 = vmul.u32.u64.compose %v1703, %v1702
        %v1705 = vextract.low.u32 %v1704
        %v1706 = vextract.high.u32 %v1704
        %v1707 = vmul.u32.u64.compose %v1703, %v1698
        %v1708 = vextract.low.u32 %v1707
        %v1709 = vextract.high.u32 %v1707
        %v1710 = vmul.u32 %v1703, %v1694
        %v1711 = vadd.s32 %v1706, %v1708
        %vm1712 = vc.u32 %v1706, %v1708
        %v1713 = vadd.s32 %v1709, 1
        %v1714 = vsel %vm1712, %v1713, %v1709
        %v1715 = vadd.s32 %v1710, %v1714
        %v1716 = vadd.s32 %v1715, 536870912
        %v1717 = vshrl.u32 %v1716, 30
        %v1718 = vshll.u32 %v1717, 30
        %v1719 = vsub.s32 %v1715, %v1718
        %vm1720 = vcmp.lt.s32.totalorder %v1719, 0
        %v1721 = vsub.s32 0, %v1719
        %v1722 = vsel %vm1720, %v1721, %v1719
        %v1723 = vclz %v1722
        %v1724 = vsub.s32 %v1723, 2
        %vm1725 = vcmp.gt.s32.totalorder 0, %v1724
        %v1726 = vsel %vm1725, 0, %v1724
        %v1727 = vsub.s32 32, %v1726
        %v1728 = vshll.u32 %v1719, %v1726
        %v1729 = vshrl.u32 %v1711, %v1727
        %v1730 = vor.u32 %v1728, %v1729
        %v1731 = vsub.s32 4294967266, %v1726
        %v1732 = vadd.s32 %v1731, 127
        %v1733 = vshll.u32 %v1732, 23
        %v1734 = vor.u32 4788187, %v1733
        %v1735 = vand.u32 2147483647, %v1734
        %v1737 = vcvt.s32.f32 %v1730
        %v1738 = vmul.f32 %v1737, %v1735
        %v1739 = vxor.u32 %v1738, 2147483648
        %v1740 = vsel %vm1657, %v1739, %v1738
        %v1741 = vsub.s32 4, %v1717
        %v1742 = vsel %vm1657, %v1741, %v1717
        %v1743 = vsel %vm1656, %v491, %v1740
        %v1744 = vsel %vm1656, 0, %v1742
        %v1745 = vcosq.f32.pop %v1743
        %v1746 = vsinq.f32.pop %v1743
        %vm1747 = vweird.f32 %v491
        %v1748 = vand.u32 %v1744, 3
        %vm1749 = vcmp.lt.s32.totalorder %v1748, 2
        %vm1750 = vcmp.eq.s32.totalorder %v1748, 0
        %v1751 = vxor.u32 %v1746, 2147483648
        %v1752 = vsel %vm1750, %v1745, %v1751
        %vm1753 = vcmp.eq.s32.totalorder %v1748, 2
        %v1754 = vxor.u32 %v1745, 2147483648
        %v1755 = vsel %vm1753, %v1754, %v1746
        %v1756 = vsel %vm1749, %v1752, %v1755
        %v1757 = vsel %vm1747, nan, %v1756
        %v1758 = vand.u32 2147483647, %v496
        %vm1759 = vcmp.le.f32.partialorder %v1758, 0.7853982
        %vm1760 = vcmp.lt.s32.totalorder %v496, 0
        %v1761 = vand.u32 %v496, 2139095040
        %v1762 = vshrl.u32 %v1761, 23
        %v1763 = vsub.s32 %v1762, 127
        %v1764 = vand.u32 2147483647, %v496
        %v1765 = vand.u32 %v1764, 8388607
        %v1766 = vor.u32 %v1765, 8388608
        %v1767 = vsub.s32 0, %v1766
        %v1768 = vadd.s32 %v1763, 1
        %vm1769 = vcmp.gt.s32.totalorder %v1768, 0
        %v1770 = vsel %vm1769, %v1768, 0
        %v1771 = vshrl.u32 %v1770, 5
        %v1772 = vand.u32 %v1770, 31
        %v1773 = vsub.s32 32, %v1772
        %v1774 = vshrl.u32 683565275, %v1773
        %v1775 = vshll.u32 683565275, %v1772
        %v1776 = vshrl.u32 2475754826, %v1773
        %v1777 = vor.u32 %v1775, %v1776
        %v1778 = vshll.u32 2475754826, %v1772
        %v1779 = vshrl.u32 2131351028, %v1773
        %v1780 = vor.u32 %v1778, %v1779
        %v1781 = vshll.u32 2131351028, %v1772
        %v1782 = vshrl.u32 2102212464, %v1773
        %v1783 = vor.u32 %v1781, %v1782
        %v1784 = vshll.u32 2102212464, %v1772
        %v1785 = vshrl.u32 920167782, %v1773
        %v1786 = vor.u32 %v1784, %v1785
        %v1787 = vshll.u32 920167782, %v1772
        %v1788 = vshrl.u32 1326507024, %v1773
        %v1789 = vor.u32 %v1787, %v1788
        %vm1790 = vcmp.lt.s32.totalorder %v1771, 1
        %vm1791 = vcmp.lt.s32.totalorder %v1771, 2
        %vm1792 = vcmp.lt.s32.totalorder %v1771, 3
        %vm1793 = vcmp.lt.s32.totalorder %v1771, 4
        %v1794 = vsel %vm1790, %v1774, %v1777
        %v1795 = vsel %vm1793, %v1783, 2102212464
        %v1796 = vsel %vm1792, %v1780, %v1795
        %v1797 = vsel %vm1791, %v1794, %v1796
        %v1798 = vsel %vm1790, %v1777, %v1780
        %v1799 = vsel %vm1793, %v1786, 920167782
        %v1800 = vsel %vm1792, %v1783, %v1799
        %v1801 = vsel %vm1791, %v1798, %v1800
        %v1802 = vsel %vm1790, %v1780, %v1783
        %v1803 = vsel %vm1793, %v1789, 1326507024
        %v1804 = vsel %vm1792, %v1786, %v1803
        %v1805 = vsel %vm1791, %v1802, %v1804
        %v1806 = vshll.u32 %v1766, 8
        %v1807 = vmul.u32.u64.compose %v1806, %v1805
        %v1808 = vextract.low.u32 %v1807
        %v1809 = vextract.high.u32 %v1807
        %v1810 = vmul.u32.u64.compose %v1806, %v1801
        %v1811 = vextract.low.u32 %v1810
        %v1812 = vextract.high.u32 %v1810
        %v1813 = vmul.u32 %v1806, %v1797
        %v1814 = vadd.s32 %v1809, %v1811
        %vm1815 = vc.u32 %v1809, %v1811
        %v1816 = vadd.s32 %v1812, 1
        %v1817 = vsel %vm1815, %v1816, %v1812
        %v1818 = vadd.s32 %v1813, %v1817
        %v1819 = vadd.s32 %v1818, 536870912
        %v1820 = vshrl.u32 %v1819, 30
        %v1821 = vshll.u32 %v1820, 30
        %v1822 = vsub.s32 %v1818, %v1821
        %vm1823 = vcmp.lt.s32.totalorder %v1822, 0
        %v1824 = vsub.s32 0, %v1822
        %v1825 = vsel %vm1823, %v1824, %v1822
        %v1826 = vclz %v1825
        %v1827 = vsub.s32 %v1826, 2
        %vm1828 = vcmp.gt.s32.totalorder 0, %v1827
        %v1829 = vsel %vm1828, 0, %v1827
        %v1830 = vsub.s32 32, %v1829
        %v1831 = vshll.u32 %v1822, %v1829
        %v1832 = vshrl.u32 %v1814, %v1830
        %v1833 = vor.u32 %v1831, %v1832
        %v1834 = vsub.s32 4294967266, %v1829
        %v1835 = vadd.s32 %v1834, 127
        %v1836 = vshll.u32 %v1835, 23
        %v1837 = vor.u32 4788187, %v1836
        %v1838 = vand.u32 2147483647, %v1837
        %v1840 = vcvt.s32.f32 %v1833
        %v1841 = vmul.f32 %v1840, %v1838
        %v1842 = vxor.u32 %v1841, 2147483648
        %v1843 = vsel %vm1760, %v1842, %v1841
        %v1844 = vsub.s32 4, %v1820
        %v1845 = vsel %vm1760, %v1844, %v1820
        %v1846 = vsel %vm1759, %v496, %v1843
        %v1847 = vsel %vm1759, 0, %v1845
        %v1848 = vcosq.f32.pop %v1846
        %v1849 = vsinq.f32.pop %v1846
        %vm1850 = vweird.f32 %v496
        %v1851 = vand.u32 %v1847, 3
        %vm1852 = vcmp.lt.s32.totalorder %v1851, 2
        %vm1853 = vcmp.eq.s32.totalorder %v1851, 0
        %v1854 = vxor.u32 %v1849, 2147483648
        %v1855 = vsel %vm1853, %v1848, %v1854
        %vm1856 = vcmp.eq.s32.totalorder %v1851, 2
        %v1857 = vxor.u32 %v1848, 2147483648
        %v1858 = vsel %vm1856, %v1857, %v1849
        %v1859 = vsel %vm1852, %v1855, %v1858
        %v1860 = vsel %vm1850, nan, %v1859
        %v1861 = vand.u32 2147483647, %v499
        %vm1862 = vcmp.le.f32.partialorder %v1861, 0.7853982
        %vm1863 = vcmp.lt.s32.totalorder %v499, 0
        %v1864 = vand.u32 %v499, 2139095040
        %v1865 = vshrl.u32 %v1864, 23
        %v1866 = vsub.s32 %v1865, 127
        %v1867 = vand.u32 2147483647, %v499
        %v1868 = vand.u32 %v1867, 8388607
        %v1869 = vor.u32 %v1868, 8388608
        %v1870 = vsub.s32 0, %v1869
        %v1871 = vadd.s32 %v1866, 1
        %vm1872 = vcmp.gt.s32.totalorder %v1871, 0
        %v1873 = vsel %vm1872, %v1871, 0
        %v1874 = vshrl.u32 %v1873, 5
        %v1875 = vand.u32 %v1873, 31
        %v1876 = vsub.s32 32, %v1875
        %v1877 = vshrl.u32 683565275, %v1876
        %v1878 = vshll.u32 683565275, %v1875
        %v1879 = vshrl.u32 2475754826, %v1876
        %v1880 = vor.u32 %v1878, %v1879
        %v1881 = vshll.u32 2475754826, %v1875
        %v1882 = vshrl.u32 2131351028, %v1876
        %v1883 = vor.u32 %v1881, %v1882
        %v1884 = vshll.u32 2131351028, %v1875
        %v1885 = vshrl.u32 2102212464, %v1876
        %v1886 = vor.u32 %v1884, %v1885
        %v1887 = vshll.u32 2102212464, %v1875
        %v1888 = vshrl.u32 920167782, %v1876
        %v1889 = vor.u32 %v1887, %v1888
        %v1890 = vshll.u32 920167782, %v1875
        %v1891 = vshrl.u32 1326507024, %v1876
        %v1892 = vor.u32 %v1890, %v1891
        %vm1893 = vcmp.lt.s32.totalorder %v1874, 1
        %vm1894 = vcmp.lt.s32.totalorder %v1874, 2
        %vm1895 = vcmp.lt.s32.totalorder %v1874, 3
        %vm1896 = vcmp.lt.s32.totalorder %v1874, 4
        %v1897 = vsel %vm1893, %v1877, %v1880
        %v1898 = vsel %vm1896, %v1886, 2102212464
        %v1899 = vsel %vm1895, %v1883, %v1898
        %v1900 = vsel %vm1894, %v1897, %v1899
        %v1901 = vsel %vm1893, %v1880, %v1883
        %v1902 = vsel %vm1896, %v1889, 920167782
        %v1903 = vsel %vm1895, %v1886, %v1902
        %v1904 = vsel %vm1894, %v1901, %v1903
        %v1905 = vsel %vm1893, %v1883, %v1886
        %v1906 = vsel %vm1896, %v1892, 1326507024
        %v1907 = vsel %vm1895, %v1889, %v1906
        %v1908 = vsel %vm1894, %v1905, %v1907
        %v1909 = vshll.u32 %v1869, 8
        %v1910 = vmul.u32.u64.compose %v1909, %v1908
        %v1911 = vextract.low.u32 %v1910
        %v1912 = vextract.high.u32 %v1910
        %v1913 = vmul.u32.u64.compose %v1909, %v1904
        %v1914 = vextract.low.u32 %v1913
        %v1915 = vextract.high.u32 %v1913
        %v1916 = vmul.u32 %v1909, %v1900
        %v1917 = vadd.s32 %v1912, %v1914
        %vm1918 = vc.u32 %v1912, %v1914
        %v1919 = vadd.s32 %v1915, 1
        %v1920 = vsel %vm1918, %v1919, %v1915
        %v1921 = vadd.s32 %v1916, %v1920
        %v1922 = vadd.s32 %v1921, 536870912
        %v1923 = vshrl.u32 %v1922, 30
        %v1924 = vshll.u32 %v1923, 30
        %v1925 = vsub.s32 %v1921, %v1924
        %vm1926 = vcmp.lt.s32.totalorder %v1925, 0
        %v1927 = vsub.s32 0, %v1925
        %v1928 = vsel %vm1926, %v1927, %v1925
        %v1929 = vclz %v1928
        %v1930 = vsub.s32 %v1929, 2
        %vm1931 = vcmp.gt.s32.totalorder 0, %v1930
        %v1932 = vsel %vm1931, 0, %v1930
        %v1933 = vsub.s32 32, %v1932
        %v1934 = vshll.u32 %v1925, %v1932
        %v1935 = vshrl.u32 %v1917, %v1933
        %v1936 = vor.u32 %v1934, %v1935
        %v1937 = vsub.s32 4294967266, %v1932
        %v1938 = vadd.s32 %v1937, 127
        %v1939 = vshll.u32 %v1938, 23
        %v1940 = vor.u32 4788187, %v1939
        %v1941 = vand.u32 2147483647, %v1940
        %v1943 = vcvt.s32.f32 %v1936
        %v1944 = vmul.f32 %v1943, %v1941
        %v1945 = vxor.u32 %v1944, 2147483648
        %v1946 = vsel %vm1863, %v1945, %v1944
        %v1947 = vsub.s32 4, %v1923
        %v1948 = vsel %vm1863, %v1947, %v1923
        %v1949 = vsel %vm1862, %v499, %v1946
        %v1950 = vsel %vm1862, 0, %v1948
        %v1951 = vcosq.f32.pop %v1949
        %v1952 = vsinq.f32.pop %v1949
        %vm1953 = vweird.f32 %v499
        %v1954 = vand.u32 %v1950, 3
        %vm1955 = vcmp.lt.s32.totalorder %v1954, 2
        %vm1956 = vcmp.eq.s32.totalorder %v1954, 0
        %v1957 = vxor.u32 %v1952, 2147483648
        %v1958 = vsel %vm1956, %v1951, %v1957
        %vm1959 = vcmp.eq.s32.totalorder %v1954, 2
        %v1960 = vxor.u32 %v1951, 2147483648
        %v1961 = vsel %vm1959, %v1960, %v1952
        %v1962 = vsel %vm1955, %v1958, %v1961
        %v1963 = vsel %vm1953, nan, %v1962
        %v1964 = vand.u32 2147483647, %v504
        %vm1965 = vcmp.le.f32.partialorder %v1964, 0.7853982
        %vm1966 = vcmp.lt.s32.totalorder %v504, 0
        %v1967 = vand.u32 %v504, 2139095040
        %v1968 = vshrl.u32 %v1967, 23
        %v1969 = vsub.s32 %v1968, 127
        %v1970 = vand.u32 2147483647, %v504
        %v1971 = vand.u32 %v1970, 8388607
        %v1972 = vor.u32 %v1971, 8388608
        %v1973 = vsub.s32 0, %v1972
        %v1974 = vadd.s32 %v1969, 1
        %vm1975 = vcmp.gt.s32.totalorder %v1974, 0
        %v1976 = vsel %vm1975, %v1974, 0
        %v1977 = vshrl.u32 %v1976, 5
        %v1978 = vand.u32 %v1976, 31
        %v1979 = vsub.s32 32, %v1978
        %v1980 = vshrl.u32 683565275, %v1979
        %v1981 = vshll.u32 683565275, %v1978
        %v1982 = vshrl.u32 2475754826, %v1979
        %v1983 = vor.u32 %v1981, %v1982
        %v1984 = vshll.u32 2475754826, %v1978
        %v1985 = vshrl.u32 2131351028, %v1979
        %v1986 = vor.u32 %v1984, %v1985
        %v1987 = vshll.u32 2131351028, %v1978
        %v1988 = vshrl.u32 2102212464, %v1979
        %v1989 = vor.u32 %v1987, %v1988
        %v1990 = vshll.u32 2102212464, %v1978
        %v1991 = vshrl.u32 920167782, %v1979
        %v1992 = vor.u32 %v1990, %v1991
        %v1993 = vshll.u32 920167782, %v1978
        %v1994 = vshrl.u32 1326507024, %v1979
        %v1995 = vor.u32 %v1993, %v1994
        %vm1996 = vcmp.lt.s32.totalorder %v1977, 1
        %vm1997 = vcmp.lt.s32.totalorder %v1977, 2
        %vm1998 = vcmp.lt.s32.totalorder %v1977, 3
        %vm1999 = vcmp.lt.s32.totalorder %v1977, 4
        %v2000 = vsel %vm1996, %v1980, %v1983
        %v2001 = vsel %vm1999, %v1989, 2102212464
        %v2002 = vsel %vm1998, %v1986, %v2001
        %v2003 = vsel %vm1997, %v2000, %v2002
        %v2004 = vsel %vm1996, %v1983, %v1986
        %v2005 = vsel %vm1999, %v1992, 920167782
        %v2006 = vsel %vm1998, %v1989, %v2005
        %v2007 = vsel %vm1997, %v2004, %v2006
        %v2008 = vsel %vm1996, %v1986, %v1989
        %v2009 = vsel %vm1999, %v1995, 1326507024
        %v2010 = vsel %vm1998, %v1992, %v2009
        %v2011 = vsel %vm1997, %v2008, %v2010
        %v2012 = vshll.u32 %v1972, 8
        %v2013 = vmul.u32.u64.compose %v2012, %v2011
        %v2014 = vextract.low.u32 %v2013
        %v2015 = vextract.high.u32 %v2013
        %v2016 = vmul.u32.u64.compose %v2012, %v2007
        %v2017 = vextract.low.u32 %v2016
        %v2018 = vextract.high.u32 %v2016
        %v2019 = vmul.u32 %v2012, %v2003
        %v2020 = vadd.s32 %v2015, %v2017
        %vm2021 = vc.u32 %v2015, %v2017
        %v2022 = vadd.s32 %v2018, 1
        %v2023 = vsel %vm2021, %v2022, %v2018
        %v2024 = vadd.s32 %v2019, %v2023
        %v2025 = vadd.s32 %v2024, 536870912
        %v2026 = vshrl.u32 %v2025, 30
        %v2027 = vshll.u32 %v2026, 30
        %v2028 = vsub.s32 %v2024, %v2027
        %vm2029 = vcmp.lt.s32.totalorder %v2028, 0
        %v2030 = vsub.s32 0, %v2028
        %v2031 = vsel %vm2029, %v2030, %v2028
        %v2032 = vclz %v2031
        %v2033 = vsub.s32 %v2032, 2
        %vm2034 = vcmp.gt.s32.totalorder 0, %v2033
        %v2035 = vsel %vm2034, 0, %v2033
        %v2036 = vsub.s32 32, %v2035
        %v2037 = vshll.u32 %v2028, %v2035
        %v2038 = vshrl.u32 %v2020, %v2036
        %v2039 = vor.u32 %v2037, %v2038
        %v2040 = vsub.s32 4294967266, %v2035
        %v2041 = vadd.s32 %v2040, 127
        %v2042 = vshll.u32 %v2041, 23
        %v2043 = vor.u32 4788187, %v2042
        %v2044 = vand.u32 2147483647, %v2043
        %v2046 = vcvt.s32.f32 %v2039
        %v2047 = vmul.f32 %v2046, %v2044
        %v2048 = vxor.u32 %v2047, 2147483648
        %v2049 = vsel %vm1966, %v2048, %v2047
        %v2050 = vsub.s32 4, %v2026
        %v2051 = vsel %vm1966, %v2050, %v2026
        %v2052 = vsel %vm1965, %v504, %v2049
        %v2053 = vsel %vm1965, 0, %v2051
        %v2054 = vcosq.f32.pop %v2052
        %v2055 = vsinq.f32.pop %v2052
        %vm2056 = vweird.f32 %v504
        %v2057 = vand.u32 %v2053, 3
        %vm2058 = vcmp.lt.s32.totalorder %v2057, 2
        %vm2059 = vcmp.eq.s32.totalorder %v2057, 0
        %v2060 = vxor.u32 %v2055, 2147483648
        %v2061 = vsel %vm2059, %v2054, %v2060
        %vm2062 = vcmp.eq.s32.totalorder %v2057, 2
        %v2063 = vxor.u32 %v2054, 2147483648
        %v2064 = vsel %vm2062, %v2063, %v2055
        %v2065 = vsel %vm2058, %v2061, %v2064
        %v2066 = vsel %vm2056, nan, %v2065
        %v2067 = vand.u32 2147483647, %v507
        %vm2068 = vcmp.le.f32.partialorder %v2067, 0.7853982
        %vm2069 = vcmp.lt.s32.totalorder %v507, 0
        %v2070 = vand.u32 %v507, 2139095040
        %v2071 = vshrl.u32 %v2070, 23
        %v2072 = vsub.s32 %v2071, 127
        %v2073 = vand.u32 2147483647, %v507
        %v2074 = vand.u32 %v2073, 8388607
        %v2075 = vor.u32 %v2074, 8388608
        %v2076 = vsub.s32 0, %v2075
        %v2077 = vadd.s32 %v2072, 1
        %vm2078 = vcmp.gt.s32.totalorder %v2077, 0
        %v2079 = vsel %vm2078, %v2077, 0
        %v2080 = vshrl.u32 %v2079, 5
        %v2081 = vand.u32 %v2079, 31
        %v2082 = vsub.s32 32, %v2081
        %v2083 = vshrl.u32 683565275, %v2082
        %v2084 = vshll.u32 683565275, %v2081
        %v2085 = vshrl.u32 2475754826, %v2082
        %v2086 = vor.u32 %v2084, %v2085
        %v2087 = vshll.u32 2475754826, %v2081
        %v2088 = vshrl.u32 2131351028, %v2082
        %v2089 = vor.u32 %v2087, %v2088
        %v2090 = vshll.u32 2131351028, %v2081
        %v2091 = vshrl.u32 2102212464, %v2082
        %v2092 = vor.u32 %v2090, %v2091
        %v2093 = vshll.u32 2102212464, %v2081
        %v2094 = vshrl.u32 920167782, %v2082
        %v2095 = vor.u32 %v2093, %v2094
        %v2096 = vshll.u32 920167782, %v2081
        %v2097 = vshrl.u32 1326507024, %v2082
        %v2098 = vor.u32 %v2096, %v2097
        %vm2099 = vcmp.lt.s32.totalorder %v2080, 1
        %vm2100 = vcmp.lt.s32.totalorder %v2080, 2
        %vm2101 = vcmp.lt.s32.totalorder %v2080, 3
        %vm2102 = vcmp.lt.s32.totalorder %v2080, 4
        %v2103 = vsel %vm2099, %v2083, %v2086
        %v2104 = vsel %vm2102, %v2092, 2102212464
        %v2105 = vsel %vm2101, %v2089, %v2104
        %v2106 = vsel %vm2100, %v2103, %v2105
        %v2107 = vsel %vm2099, %v2086, %v2089
        %v2108 = vsel %vm2102, %v2095, 920167782
        %v2109 = vsel %vm2101, %v2092, %v2108
        %v2110 = vsel %vm2100, %v2107, %v2109
        %v2111 = vsel %vm2099, %v2089, %v2092
        %v2112 = vsel %vm2102, %v2098, 1326507024
        %v2113 = vsel %vm2101, %v2095, %v2112
        %v2114 = vsel %vm2100, %v2111, %v2113
        %v2115 = vshll.u32 %v2075, 8
        %v2116 = vmul.u32.u64.compose %v2115, %v2114
        %v2117 = vextract.low.u32 %v2116
        %v2118 = vextract.high.u32 %v2116
        %v2119 = vmul.u32.u64.compose %v2115, %v2110
        %v2120 = vextract.low.u32 %v2119
        %v2121 = vextract.high.u32 %v2119
        %v2122 = vmul.u32 %v2115, %v2106
        %v2123 = vadd.s32 %v2118, %v2120
        %vm2124 = vc.u32 %v2118, %v2120
        %v2125 = vadd.s32 %v2121, 1
        %v2126 = vsel %vm2124, %v2125, %v2121
        %v2127 = vadd.s32 %v2122, %v2126
        %v2128 = vadd.s32 %v2127, 536870912
        %v2129 = vshrl.u32 %v2128, 30
        %v2130 = vshll.u32 %v2129, 30
        %v2131 = vsub.s32 %v2127, %v2130
        %vm2132 = vcmp.lt.s32.totalorder %v2131, 0
        %v2133 = vsub.s32 0, %v2131
        %v2134 = vsel %vm2132, %v2133, %v2131
        %v2135 = vclz %v2134
        %v2136 = vsub.s32 %v2135, 2
        %vm2137 = vcmp.gt.s32.totalorder 0, %v2136
        %v2138 = vsel %vm2137, 0, %v2136
        %v2139 = vsub.s32 32, %v2138
        %v2140 = vshll.u32 %v2131, %v2138
        %v2141 = vshrl.u32 %v2123, %v2139
        %v2142 = vor.u32 %v2140, %v2141
        %v2143 = vsub.s32 4294967266, %v2138
        %v2144 = vadd.s32 %v2143, 127
        %v2145 = vshll.u32 %v2144, 23
        %v2146 = vor.u32 4788187, %v2145
        %v2147 = vand.u32 2147483647, %v2146
        %v2149 = vcvt.s32.f32 %v2142
        %v2150 = vmul.f32 %v2149, %v2147
        %v2151 = vxor.u32 %v2150, 2147483648
        %v2152 = vsel %vm2069, %v2151, %v2150
        %v2153 = vsub.s32 4, %v2129
        %v2154 = vsel %vm2069, %v2153, %v2129
        %v2155 = vsel %vm2068, %v507, %v2152
        %v2156 = vsel %vm2068, 0, %v2154
        %v2157 = vcosq.f32.pop %v2155
        %v2158 = vsinq.f32.pop %v2155
        %vm2159 = vweird.f32 %v507
        %v2160 = vand.u32 %v2156, 3
        %vm2161 = vcmp.lt.s32.totalorder %v2160, 2
        %vm2162 = vcmp.eq.s32.totalorder %v2160, 0
        %v2163 = vxor.u32 %v2158, 2147483648
        %v2164 = vsel %vm2162, %v2157, %v2163
        %vm2165 = vcmp.eq.s32.totalorder %v2160, 2
        %v2166 = vxor.u32 %v2157, 2147483648
        %v2167 = vsel %vm2165, %v2166, %v2158
        %v2168 = vsel %vm2161, %v2164, %v2167
        %v2169 = vsel %vm2159, nan, %v2168
        %v2170 = vpack.c.bf16 %v1551, %v1448
        %v2171 = vpack.c.bf16 %v1757, %v1654
        %v2172 = vpack.c.bf16 %v1963, %v1860
        %v2173 = vpack.c.bf16 %v2169, %v2066
        %v2174 = vld [vmem:[%s2] sm:$0xf]
        %v2175 = vld [vmem:[%s3] sm:$0xf]
        %v2176 = vld [vmem:[%s3 + $0x4] sm:$0xf]
        %v2179 = vunpack.c.l.b16 %v2175
        %v2180 = vunpack.c.l.b16 %v2176
        %v2181 = vpack.c.b16 %v2180, %v2179
        %vm2183 = vcmask 130048
        %v2185 = vsel %vm2183, %v1342, 0
        %v2188 = vsel %vm2183, %v1343, 0
        %v2191 = vsel %vm2183, %v1344, 0
        %v2194 = vsel %vm2183, %v1345, 0
        %2196 = vmatprep.subr.bf16.mxu0 0
        %2197 = vmatpush1.bf16.msra.mxu0 %v2181
        %2198 = vmatprep.subr.bf16.mxu0 0
        %2199 = vmatpush1.bf16.msra.mxu0 0
        %2200 = vmatprep.subr.bf16.mxu0 0
        %2201 = vmatpush1.bf16.msra.mxu0 0
        %2202 = vmatprep.subr.bf16.mxu0 0
        %2203 = vmatpush1.bf16.msra.mxu0 0
        %2204 = vmatprep.subr.bf16.mxu0 0
        %2205 = vmatpush1.bf16.msra.mxu0 0
        %2206 = vmatprep.subr.bf16.mxu0 0
        %2207 = vmatpush1.bf16.msra.mxu0 0
        %2208 = vmatprep.subr.bf16.mxu0 0
        %2209 = vmatpush1.bf16.msra.mxu0 0
        %2210 = vmatprep.subr.bf16.mxu0 0
        %2211 = vmatpush1.bf16.msra.mxu0 0
        %2212 = vmatprep.subr.bf16.mxu0 0
        %2213 = vmatpush1.bf16.msra.mxu0 0
        %2214 = vmatprep.subr.bf16.mxu0 0
        %2215 = vmatpush1.bf16.msra.mxu0 0
        %2216 = vmatprep.subr.bf16.mxu0 0
        %2217 = vmatpush1.bf16.msra.mxu0 0
        %2218 = vmatprep.subr.bf16.mxu0 0
        %2219 = vmatpush1.bf16.msra.mxu0 0
        %2220 = vmatprep.subr.bf16.mxu0 0
        %2221 = vmatpush1.bf16.msra.mxu0 0
        %2222 = vmatprep.subr.bf16.mxu0 0
        %2223 = vmatpush1.bf16.msra.mxu0 0
        %2224 = vmatprep.subr.bf16.mxu0 0
        %2225 = vmatpush1.bf16.msra.mxu0 0
        %2226 = vmatprep.subr.bf16.mxu0 0
        %2227 = vmatpush1.bf16.msra.mxu0 0
        %2228 = vmatprep.mubr.bf16.mxu0 0
        %2229 = vmatmul.mubr.bf16.gmra.mrb[0].mxu0 %v2185
        %v2230 = vpop.f32.mrb[0].mxu0
        %v2231 = vadd.f32 0.0, %v2230
        %v2232 = vpop.f32.mrb[0].mxu0
        %v2233 = vpop.f32.mrb[0].mxu0
        %v2234 = vadd.f32 0.0, %v2233
        %v2235 = vpop.f32.mrb[0].mxu0
        %2236 = vmatprep.mubr.bf16.mxu0 0
        %2237 = vmatmul.mubr.bf16.gmra.mrb[0].mxu0 %v2188
        %v2238 = vpop.f32.mrb[0].mxu0
        %v2239 = vadd.f32 0.0, %v2238
        %v2240 = vpop.f32.mrb[0].mxu0
        %v2241 = vpop.f32.mrb[0].mxu0
        %v2242 = vadd.f32 0.0, %v2241
        %v2243 = vpop.f32.mrb[0].mxu0
        %2244 = vmatprep.mubr.bf16.mxu0 0
        %2245 = vmatmul.mubr.bf16.gmra.mrb[0].mxu0 %v2191
        %v2246 = vpop.f32.mrb[0].mxu0
        %v2247 = vadd.f32 0.0, %v2246
        %v2248 = vpop.f32.mrb[0].mxu0
        %v2249 = vpop.f32.mrb[0].mxu0
        %v2250 = vadd.f32 0.0, %v2249
        %v2251 = vpop.f32.mrb[0].mxu0
        %2252 = vmatprep.mubr.bf16.mxu0 0
        %2253 = vmatmul.mubr.bf16.gmra.mrb[0].mxu0 %v2194
        %v2254 = vpop.f32.mrb[0].mxu0
        %v2255 = vadd.f32 0.0, %v2254
        %v2256 = vpop.f32.mrb[0].mxu0
        %v2257 = vpop.f32.mrb[0].mxu0
        %v2258 = vadd.f32 0.0, %v2257
        %v2259 = vpop.f32.mrb[0].mxu0
        %2260 = vdwg.mxu0
        %v2262 = vsel %vm441, %v2174, 0
        %2264 = vmatprep.subr.bf16.mxu0 0
        %2265 = vmatpush1.bf16.msra.mxu0 %v2262
        %2266 = vmatprep.subr.bf16.mxu0 0
        %2267 = vmatpush1.bf16.msra.mxu0 0
        %2268 = vmatprep.subr.bf16.mxu0 0
        %2269 = vmatpush1.bf16.msra.mxu0 0
        %2270 = vmatprep.subr.bf16.mxu0 0
        %2271 = vmatpush1.bf16.msra.mxu0 0
        %2272 = vmatprep.subr.bf16.mxu0 0
        %2273 = vmatpush1.bf16.msra.mxu0 0
        %2274 = vmatprep.subr.bf16.mxu0 0
        %2275 = vmatpush1.bf16.msra.mxu0 0
        %2276 = vmatprep.subr.bf16.mxu0 0
        %2277 = vmatpush1.bf16.msra.mxu0 0
        %2278 = vmatprep.subr.bf16.mxu0 0
        %2279 = vmatpush1.bf16.msra.mxu0 0
        %2280 = vmatprep.subr.bf16.mxu0 0
        %2281 = vmatpush1.bf16.msra.mxu0 0
        %2282 = vmatprep.subr.bf16.mxu0 0
        %2283 = vmatpush1.bf16.msra.mxu0 0
        %2284 = vmatprep.subr.bf16.mxu0 0
        %2285 = vmatpush1.bf16.msra.mxu0 0
        %2286 = vmatprep.subr.bf16.mxu0 0
        %2287 = vmatpush1.bf16.msra.mxu0 0
        %2288 = vmatprep.subr.bf16.mxu0 0
        %2289 = vmatpush1.bf16.msra.mxu0 0
        %2290 = vmatprep.subr.bf16.mxu0 0
        %2291 = vmatpush1.bf16.msra.mxu0 0
        %2292 = vmatprep.subr.bf16.mxu0 0
        %2293 = vmatpush1.bf16.msra.mxu0 0
        %2294 = vmatprep.subr.bf16.mxu0 0
        %2295 = vmatpush1.bf16.msra.mxu0 0
        %2296 = vmatprep.mubr.bf16.mxu0 0
        %2297 = vmatmul.mubr.bf16.gmra.mrb[0].mxu0 %v430
        %v2298 = vpop.f32.mrb[0].mxu0
        %v2299 = vadd.f32 %v2231, %v2298
        %v2300 = vpop.f32.mrb[0].mxu0
        %v2301 = vpop.f32.mrb[0].mxu0
        %v2302 = vadd.f32 %v2234, %v2301
        %v2303 = vpop.f32.mrb[0].mxu0
        %2304 = vmatprep.mubr.bf16.mxu0 0
        %2305 = vmatmul.mubr.bf16.gmra.mrb[0].mxu0 %v433
        %v2306 = vpop.f32.mrb[0].mxu0
        %v2307 = vadd.f32 %v2239, %v2306
        %v2308 = vpop.f32.mrb[0].mxu0
        %v2309 = vpop.f32.mrb[0].mxu0
        %v2310 = vadd.f32 %v2242, %v2309
        %v2311 = vpop.f32.mrb[0].mxu0
        %2312 = vmatprep.mubr.bf16.mxu0 0
        %2313 = vmatmul.mubr.bf16.gmra.mrb[0].mxu0 %v436
        %v2314 = vpop.f32.mrb[0].mxu0
        %v2315 = vadd.f32 %v2247, %v2314
        %v2316 = vpop.f32.mrb[0].mxu0
        %v2317 = vpop.f32.mrb[0].mxu0
        %v2318 = vadd.f32 %v2250, %v2317
        %v2319 = vpop.f32.mrb[0].mxu0
        %2320 = vmatprep.mubr.bf16.mxu0 0
        %2321 = vmatmul.mubr.bf16.gmra.mrb[0].mxu0 %v439
        %v2322 = vpop.f32.mrb[0].mxu0
        %v2323 = vadd.f32 %v2255, %v2322
        %v2324 = vpop.f32.mrb[0].mxu0
        %v2325 = vpop.f32.mrb[0].mxu0
        %v2326 = vadd.f32 %v2258, %v2325
        %v2327 = vpop.f32.mrb[0].mxu0
        %2328 = vdwg.mxu0
        %v2329 = vld [vmem:[%s4] sm:$0xf]
        %v2330 = vld [vmem:[%s4 + $0x4] sm:$0xf]
        %v2333 = vunpack.c.l.b16 %v2329
        %v2334 = vunpack.c.l.b16 %v2330
        %v2335 = vpack.c.b16 %v2334, %v2333
        %v2338 = vsel %vm2183, %v2170, 0
        %v2341 = vsel %vm2183, %v2171, 0
        %v2344 = vsel %vm2183, %v2172, 0
        %v2347 = vsel %vm2183, %v2173, 0
        %2349 = vmatprep.subr.bf16.mxu0 0
        %2350 = vmatpush1.bf16.msra.mxu0 %v2335
        %2351 = vmatprep.subr.bf16.mxu0 0
        %2352 = vmatpush1.bf16.msra.mxu0 0
        %2353 = vmatprep.subr.bf16.mxu0 0
        %2354 = vmatpush1.bf16.msra.mxu0 0
        %2355 = vmatprep.subr.bf16.mxu0 0
        %2356 = vmatpush1.bf16.msra.mxu0 0
        %2357 = vmatprep.subr.bf16.mxu0 0
        %2358 = vmatpush1.bf16.msra.mxu0 0
        %2359 = vmatprep.subr.bf16.mxu0 0
        %2360 = vmatpush1.bf16.msra.mxu0 0
        %2361 = vmatprep.subr.bf16.mxu0 0
        %2362 = vmatpush1.bf16.msra.mxu0 0
        %2363 = vmatprep.subr.bf16.mxu0 0
        %2364 = vmatpush1.bf16.msra.mxu0 0
        %2365 = vmatprep.subr.bf16.mxu0 0
        %2366 = vmatpush1.bf16.msra.mxu0 0
        %2367 = vmatprep.subr.bf16.mxu0 0
        %2368 = vmatpush1.bf16.msra.mxu0 0
        %2369 = vmatprep.subr.bf16.mxu0 0
        %2370 = vmatpush1.bf16.msra.mxu0 0
        %2371 = vmatprep.subr.bf16.mxu0 0
        %2372 = vmatpush1.bf16.msra.mxu0 0
        %2373 = vmatprep.subr.bf16.mxu0 0
        %2374 = vmatpush1.bf16.msra.mxu0 0
        %2375 = vmatprep.subr.bf16.mxu0 0
        %2376 = vmatpush1.bf16.msra.mxu0 0
        %2377 = vmatprep.subr.bf16.mxu0 0
        %2378 = vmatpush1.bf16.msra.mxu0 0
        %2379 = vmatprep.subr.bf16.mxu0 0
        %2380 = vmatpush1.bf16.msra.mxu0 0
        %2381 = vmatprep.mubr.bf16.mxu0 0
        %2382 = vmatmul.mubr.bf16.gmra.mrb[0].mxu0 %v2338
        %v2383 = vpop.f32.mrb[0].mxu0
        %v2384 = vadd.f32 0.0, %v2383
        %v2385 = vpop.f32.mrb[0].mxu0
        %v2386 = vpop.f32.mrb[0].mxu0
        %v2387 = vadd.f32 0.0, %v2386
        %v2388 = vpop.f32.mrb[0].mxu0
        %2389 = vmatprep.mubr.bf16.mxu0 0
        %2390 = vmatmul.mubr.bf16.gmra.mrb[0].mxu0 %v2341
        %v2391 = vpop.f32.mrb[0].mxu0
        %v2392 = vadd.f32 0.0, %v2391
        %v2393 = vpop.f32.mrb[0].mxu0
        %v2394 = vpop.f32.mrb[0].mxu0
        %v2395 = vadd.f32 0.0, %v2394
        %v2396 = vpop.f32.mrb[0].mxu0
        %2397 = vmatprep.mubr.bf16.mxu0 0
        %2398 = vmatmul.mubr.bf16.gmra.mrb[0].mxu0 %v2344
        %v2399 = vpop.f32.mrb[0].mxu0
        %v2400 = vadd.f32 0.0, %v2399
        %v2401 = vpop.f32.mrb[0].mxu0
        %v2402 = vpop.f32.mrb[0].mxu0
        %v2403 = vadd.f32 0.0, %v2402
        %v2404 = vpop.f32.mrb[0].mxu0
        %2405 = vmatprep.mubr.bf16.mxu0 0
        %2406 = vmatmul.mubr.bf16.gmra.mrb[0].mxu0 %v2347
        %v2407 = vpop.f32.mrb[0].mxu0
        %v2408 = vadd.f32 0.0, %v2407
        %v2409 = vpop.f32.mrb[0].mxu0
        %v2410 = vpop.f32.mrb[0].mxu0
        %v2411 = vadd.f32 0.0, %v2410
        %v2412 = vpop.f32.mrb[0].mxu0
        %2413 = vdwg.mxu0
        %v2414 = vadd.f32 %v2299, %v2384
        %v2415 = vadd.f32 %v2302, %v2387
        %v2416 = vadd.f32 %v2307, %v2392
        %v2417 = vadd.f32 %v2310, %v2395
        %v2418 = vadd.f32 %v2315, %v2400
        %v2419 = vadd.f32 %v2318, %v2403
        %v2420 = vadd.f32 %v2323, %v2408
        %v2421 = vadd.f32 %v2326, %v2411
        %v2422 = vld [vmem:[%s5] sm:$0x1]
        %v2424 = vlaneseq
        %v2425 = vshrl.u32 %v2424, 7
        %v2426 = vsub.s32 0, %v2425
        %v2427 = vrot.slane %v2422, %v2426
        %v2429 = vadd.f32 %v2414, %v2427
        %v2430 = vadd.f32 %v2415, %v2427
        %v2431 = vadd.f32 %v2416, %v2427
        %v2432 = vadd.f32 %v2417, %v2427
        %v2433 = vadd.f32 %v2418, %v2427
        %v2434 = vadd.f32 %v2419, %v2427
        %v2435 = vadd.f32 %v2420, %v2427
        %v2436 = vadd.f32 %v2421, %v2427
        %v2437 = vmax.f32 %v2429, 0.0
        %v2438 = vmax.f32 %v2430, 0.0
        %v2439 = vmax.f32 %v2431, 0.0
        %v2440 = vmax.f32 %v2432, 0.0
        %v2441 = vmax.f32 %v2433, 0.0
        %v2442 = vmax.f32 %v2434, 0.0
        %v2443 = vmax.f32 %v2435, 0.0
        %v2444 = vmax.f32 %v2436, 0.0
        %v2445 = vpack.c.bf16 %v2438, %v2437
        %v2446 = vpack.c.bf16 %v2440, %v2439
        %v2447 = vpack.c.bf16 %v2442, %v2441
        %v2448 = vpack.c.bf16 %v2444, %v2443
        %v2449 = vld [vmem:[%s6] sm:$0xf]
        %v2450 = vld [vmem:[%s6 + $0x4] sm:$0xf]
        %v2451 = vld [vmem:[%s6 + $0x8] sm:$0xf]
        %v2452 = vld [vmem:[%s6 + $0xc] sm:$0xf]
        %v2453 = vld [vmem:[%s7] sm:$0x1]
        %v2455 = vlaneseq
        %v2456 = vshrl.u32 %v2455, 7
        %v2457 = vsub.s32 0, %v2456
        %v2458 = vrot.slane %v2453, %v2457
        %v2464 = vunpack.c.l.b16 %v2449
        %v2465 = vunpack.c.l.b16 %v2450
        %v2466 = vunpack.c.l.b16 %v2451
        %v2467 = vunpack.c.l.b16 %v2452
        %v2468 = vpack.c.b16 %v2465, %v2464
        %v2469 = vpack.c.b16 %v2467, %v2466
        %vm2472 = vcmask 261120
        %v2474 = vsel %vm2472, %v2445, 0
        %v2477 = vsel %vm2472, %v2446, 0
        %v2480 = vsel %vm2472, %v2447, 0
        %v2483 = vsel %vm2472, %v2448, 0
        %2485 = vmatprep.subr.bf16.mxu0 0
        %2486 = vmatpush1.bf16.msra.mxu0 %v2468
        %2487 = vmatprep.subr.bf16.mxu0 0
        %2488 = vmatpush1.bf16.msra.mxu0 %v2469
        %2489 = vmatprep.subr.bf16.mxu0 0
        %2490 = vmatpush1.bf16.msra.mxu0 0
        %2491 = vmatprep.subr.bf16.mxu0 0
        %2492 = vmatpush1.bf16.msra.mxu0 0
        %2493 = vmatprep.subr.bf16.mxu0 0
        %2494 = vmatpush1.bf16.msra.mxu0 0
        %2495 = vmatprep.subr.bf16.mxu0 0
        %2496 = vmatpush1.bf16.msra.mxu0 0
        %2497 = vmatprep.subr.bf16.mxu0 0
        %2498 = vmatpush1.bf16.msra.mxu0 0
        %2499 = vmatprep.subr.bf16.mxu0 0
        %2500 = vmatpush1.bf16.msra.mxu0 0
        %2501 = vmatprep.subr.bf16.mxu0 0
        %2502 = vmatpush1.bf16.msra.mxu0 0
        %2503 = vmatprep.subr.bf16.mxu0 0
        %2504 = vmatpush1.bf16.msra.mxu0 0
        %2505 = vmatprep.subr.bf16.mxu0 0
        %2506 = vmatpush1.bf16.msra.mxu0 0
        %2507 = vmatprep.subr.bf16.mxu0 0
        %2508 = vmatpush1.bf16.msra.mxu0 0
        %2509 = vmatprep.subr.bf16.mxu0 0
        %2510 = vmatpush1.bf16.msra.mxu0 0
        %2511 = vmatprep.subr.bf16.mxu0 0
        %2512 = vmatpush1.bf16.msra.mxu0 0
        %2513 = vmatprep.subr.bf16.mxu0 0
        %2514 = vmatpush1.bf16.msra.mxu0 0
        %2515 = vmatprep.subr.bf16.mxu0 0
        %2516 = vmatpush1.bf16.msra.mxu0 0
        %2517 = vmatprep.mubr.bf16.mxu0 0
        %2518 = vmatmul.mubr.bf16.gmra.mrb[0].mxu0 %v2474
        %v2519 = vpop.f32.mrb[0].mxu0
        %v2520 = vadd.f32 %v2458, %v2519
        %v2521 = vpop.f32.mrb[0].mxu0
        %v2522 = vpop.f32.mrb[0].mxu0
        %v2523 = vadd.f32 %v2458, %v2522
        %v2524 = vpop.f32.mrb[0].mxu0
        %2525 = vmatprep.mubr.bf16.mxu0 0
        %2526 = vmatmul.mubr.bf16.gmra.mrb[0].mxu0 %v2477
        %v2527 = vpop.f32.mrb[0].mxu0
        %v2528 = vadd.f32 %v2458, %v2527
        %v2529 = vpop.f32.mrb[0].mxu0
        %v2530 = vpop.f32.mrb[0].mxu0
        %v2531 = vadd.f32 %v2458, %v2530
        %v2532 = vpop.f32.mrb[0].mxu0
        %2533 = vmatprep.mubr.bf16.mxu0 0
        %2534 = vmatmul.mubr.bf16.gmra.mrb[0].mxu0 %v2480
        %v2535 = vpop.f32.mrb[0].mxu0
        %v2536 = vadd.f32 %v2458, %v2535
        %v2537 = vpop.f32.mrb[0].mxu0
        %v2538 = vpop.f32.mrb[0].mxu0
        %v2539 = vadd.f32 %v2458, %v2538
        %v2540 = vpop.f32.mrb[0].mxu0
        %2541 = vmatprep.mubr.bf16.mxu0 0
        %2542 = vmatmul.mubr.bf16.gmra.mrb[0].mxu0 %v2483
        %v2543 = vpop.f32.mrb[0].mxu0
        %v2544 = vadd.f32 %v2458, %v2543
        %v2545 = vpop.f32.mrb[0].mxu0
        %v2546 = vpop.f32.mrb[0].mxu0
        %v2547 = vadd.f32 %v2458, %v2546
        %v2548 = vpop.f32.mrb[0].mxu0
        %2549 = vdwg.mxu0
        %v2558 = vrot.slane %v2520, 1
        %v2559 = vrot.slane %v2523, 1
        %v2560 = vrot.slane %v2528, 1
        %v2561 = vrot.slane %v2531, 1
        %v2562 = vrot.slane %v2536, 1
        %v2563 = vrot.slane %v2539, 1
        %v2564 = vrot.slane %v2544, 1
        %v2565 = vrot.slane %v2547, 1
        %v2574 = vmax.f32 %v2520, %v2558
        %v2575 = vmax.f32 %v2523, %v2559
        %v2576 = vmax.f32 %v2528, %v2560
        %v2577 = vmax.f32 %v2531, %v2561
        %v2578 = vmax.f32 %v2536, %v2562
        %v2579 = vmax.f32 %v2539, %v2563
        %v2580 = vmax.f32 %v2544, %v2564
        %v2581 = vmax.f32 %v2547, %v2565
        %v2582 = vrot.slane %v2520, 2
        %v2583 = vrot.slane %v2523, 2
        %v2584 = vrot.slane %v2528, 2
        %v2585 = vrot.slane %v2531, 2
        %v2586 = vrot.slane %v2536, 2
        %v2587 = vrot.slane %v2539, 2
        %v2588 = vrot.slane %v2544, 2
        %v2589 = vrot.slane %v2547, 2
        %v2598 = vmax.f32 %v2574, %v2582
        %v2599 = vmax.f32 %v2575, %v2583
        %v2600 = vmax.f32 %v2576, %v2584
        %v2601 = vmax.f32 %v2577, %v2585
        %v2602 = vmax.f32 %v2578, %v2586
        %v2603 = vmax.f32 %v2579, %v2587
        %v2604 = vmax.f32 %v2580, %v2588
        %v2605 = vmax.f32 %v2581, %v2589
        %v2606 = vrot.slane %v2520, 3
        %v2607 = vrot.slane %v2523, 3
        %v2608 = vrot.slane %v2528, 3
        %v2609 = vrot.slane %v2531, 3
        %v2610 = vrot.slane %v2536, 3
        %v2611 = vrot.slane %v2539, 3
        %v2612 = vrot.slane %v2544, 3
        %v2613 = vrot.slane %v2547, 3
        %v2622 = vmax.f32 %v2598, %v2606
        %v2623 = vmax.f32 %v2599, %v2607
        %v2624 = vmax.f32 %v2600, %v2608
        %v2625 = vmax.f32 %v2601, %v2609
        %v2626 = vmax.f32 %v2602, %v2610
        %v2627 = vmax.f32 %v2603, %v2611
        %v2628 = vmax.f32 %v2604, %v2612
        %v2629 = vmax.f32 %v2605, %v2613
        %v2630 = vrot.slane %v2520, 4
        %v2631 = vrot.slane %v2523, 4
        %v2632 = vrot.slane %v2528, 4
        %v2633 = vrot.slane %v2531, 4
        %v2634 = vrot.slane %v2536, 4
        %v2635 = vrot.slane %v2539, 4
        %v2636 = vrot.slane %v2544, 4
        %v2637 = vrot.slane %v2547, 4
        %v2646 = vmax.f32 %v2622, %v2630
        %v2647 = vmax.f32 %v2623, %v2631
        %v2648 = vmax.f32 %v2624, %v2632
        %v2649 = vmax.f32 %v2625, %v2633
        %v2650 = vmax.f32 %v2626, %v2634
        %v2651 = vmax.f32 %v2627, %v2635
        %v2652 = vmax.f32 %v2628, %v2636
        %v2653 = vmax.f32 %v2629, %v2637
        %v2654 = vrot.slane %v2520, 5
        %v2655 = vrot.slane %v2523, 5
        %v2656 = vrot.slane %v2528, 5
        %v2657 = vrot.slane %v2531, 5
        %v2658 = vrot.slane %v2536, 5
        %v2659 = vrot.slane %v2539, 5
        %v2660 = vrot.slane %v2544, 5
        %v2661 = vrot.slane %v2547, 5
        %v2670 = vmax.f32 %v2646, %v2654
        %v2671 = vmax.f32 %v2647, %v2655
        %v2672 = vmax.f32 %v2648, %v2656
        %v2673 = vmax.f32 %v2649, %v2657
        %v2674 = vmax.f32 %v2650, %v2658
        %v2675 = vmax.f32 %v2651, %v2659
        %v2676 = vmax.f32 %v2652, %v2660
        %v2677 = vmax.f32 %v2653, %v2661
        %v2678 = vrot.slane %v2520, 6
        %v2679 = vrot.slane %v2523, 6
        %v2680 = vrot.slane %v2528, 6
        %v2681 = vrot.slane %v2531, 6
        %v2682 = vrot.slane %v2536, 6
        %v2683 = vrot.slane %v2539, 6
        %v2684 = vrot.slane %v2544, 6
        %v2685 = vrot.slane %v2547, 6
        %v2694 = vmax.f32 %v2670, %v2678
        %v2695 = vmax.f32 %v2671, %v2679
        %v2696 = vmax.f32 %v2672, %v2680
        %v2697 = vmax.f32 %v2673, %v2681
        %v2698 = vmax.f32 %v2674, %v2682
        %v2699 = vmax.f32 %v2675, %v2683
        %v2700 = vmax.f32 %v2676, %v2684
        %v2701 = vmax.f32 %v2677, %v2685
        %v2702 = vrot.slane %v2520, 7
        %v2703 = vrot.slane %v2523, 7
        %v2704 = vrot.slane %v2528, 7
        %v2705 = vrot.slane %v2531, 7
        %v2706 = vrot.slane %v2536, 7
        %v2707 = vrot.slane %v2539, 7
        %v2708 = vrot.slane %v2544, 7
        %v2709 = vrot.slane %v2547, 7
        %v2718 = vmax.f32 %v2694, %v2702
        %v2719 = vmax.f32 %v2695, %v2703
        %v2720 = vmax.f32 %v2696, %v2704
        %v2721 = vmax.f32 %v2697, %v2705
        %v2722 = vmax.f32 %v2698, %v2706
        %v2723 = vmax.f32 %v2699, %v2707
        %v2724 = vmax.f32 %v2700, %v2708
        %v2725 = vmax.f32 %v2701, %v2709
        %v2726 = vpack.c.bf16 %v2718, %v2718
        %v2727 = vpack.c.bf16 %v2719, %v2719
        %v2728 = vpack.c.bf16 %v2720, %v2720
        %v2729 = vpack.c.bf16 %v2721, %v2721
        %v2730 = vpack.c.bf16 %v2722, %v2722
        %v2731 = vpack.c.bf16 %v2723, %v2723
        %v2732 = vpack.c.bf16 %v2724, %v2724
        %v2733 = vpack.c.bf16 %v2725, %v2725
        %v2734 = vld [vmem:[%s8] sm:$0xf]
        %v2735 = vld [vmem:[%s8 + $0x4] sm:$0xf]
        %v2736 = vld [vmem:[%s8 + $0x8] sm:$0xf]
        %v2737 = vld [vmem:[%s8 + $0xc] sm:$0xf]
        %v2738 = vld [vmem:[%s9] sm:$0x1]
        %v2740 = vlaneseq
        %v2741 = vshrl.u32 %v2740, 7
        %v2742 = vsub.s32 0, %v2741
        %v2743 = vrot.slane %v2738, %v2742
        %v2753 = vunpack.c.l.b16 %v2726
        %v2754 = vunpack.c.l.b16 %v2727
        %v2755 = vunpack.c.l.b16 %v2728
        %v2756 = vunpack.c.l.b16 %v2729
        %v2757 = vunpack.c.l.b16 %v2730
        %v2758 = vunpack.c.l.b16 %v2731
        %v2759 = vunpack.c.l.b16 %v2732
        %v2760 = vunpack.c.l.b16 %v2733
        %v2761 = vrot.slane %v2754, 7
        %vm2762 = vcmask 1041409
        %v2763 = vsel %vm2762, %v2761, %v2753
        %v2764 = vrot.slane %v2755, 6
        %vm2765 = vcmask 1042434
        %v2766 = vsel %vm2765, %v2764, %v2763
        %v2767 = vrot.slane %v2756, 5
        %vm2768 = vcmask 1043459
        %v2769 = vsel %vm2768, %v2767, %v2766
        %v2770 = vrot.slane %v2757, 4
        %vm2771 = vcmask 1044484
        %v2772 = vsel %vm2771, %v2770, %v2769
        %v2773 = vrot.slane %v2758, 3
        %vm2774 = vcmask 1045509
        %v2775 = vsel %vm2774, %v2773, %v2772
        %v2776 = vrot.slane %v2759, 2
        %vm2777 = vcmask 1046534
        %v2778 = vsel %vm2777, %v2776, %v2775
        %v2779 = vrot.slane %v2760, 1
        %vm2780 = vcmask 1047559
        %v2781 = vsel %vm2780, %v2779, %v2778
        %v2782 = vpack.c.b16 %v2781, %v2781
        %v2787 = vunpack.c.l.b16 %v2734
        %v2788 = vunpack.c.l.b16 %v2735
        %v2789 = vunpack.c.l.b16 %v2736
        %v2790 = vunpack.c.l.b16 %v2737
        %v2791 = vpack.c.b16 %v2788, %v2787
        %v2792 = vpack.c.b16 %v2790, %v2789
        %v2796 = vsel %vm2472, %v2782, 0
        %2798 = vmatprep.subr.bf16.mxu0 0
        %2799 = vmatpush1.bf16.msra.mxu0 %v2791
        %2800 = vmatprep.subr.bf16.mxu0 0
        %2801 = vmatpush1.bf16.msra.mxu0 %v2792
        %2802 = vmatprep.subr.bf16.mxu0 0
        %2803 = vmatpush1.bf16.msra.mxu0 0
        %2804 = vmatprep.subr.bf16.mxu0 0
        %2805 = vmatpush1.bf16.msra.mxu0 0
        %2806 = vmatprep.subr.bf16.mxu0 0
        %2807 = vmatpush1.bf16.msra.mxu0 0
        %2808 = vmatprep.subr.bf16.mxu0 0
        %2809 = vmatpush1.bf16.msra.mxu0 0
        %2810 = vmatprep.subr.bf16.mxu0 0
        %2811 = vmatpush1.bf16.msra.mxu0 0
        %2812 = vmatprep.subr.bf16.mxu0 0
        %2813 = vmatpush1.bf16.msra.mxu0 0
        %2814 = vmatprep.subr.bf16.mxu0 0
        %2815 = vmatpush1.bf16.msra.mxu0 0
        %2816 = vmatprep.subr.bf16.mxu0 0
        %2817 = vmatpush1.bf16.msra.mxu0 0
        %2818 = vmatprep.subr.bf16.mxu0 0
        %2819 = vmatpush1.bf16.msra.mxu0 0
        %2820 = vmatprep.subr.bf16.mxu0 0
        %2821 = vmatpush1.bf16.msra.mxu0 0
        %2822 = vmatprep.subr.bf16.mxu0 0
        %2823 = vmatpush1.bf16.msra.mxu0 0
        %2824 = vmatprep.subr.bf16.mxu0 0
        %2825 = vmatpush1.bf16.msra.mxu0 0
        %2826 = vmatprep.subr.bf16.mxu0 0
        %2827 = vmatpush1.bf16.msra.mxu0 0
        %2828 = vmatprep.subr.bf16.mxu0 0
        %2829 = vmatpush1.bf16.msra.mxu0 0
        %2830 = vmatprep.mubr.bf16.mxu0 0
        %2831 = vmatmul.mubr.bf16.gmra.mrb[0].mxu0 %v2796
        %v2832 = vpop.f32.mrb[0].mxu0
        %v2833 = vadd.f32 %v2743, %v2832
        %v2834 = vpop.f32.mrb[0].mxu0
        %v2835 = vpop.f32.mrb[0].mxu0
        %v2836 = vpop.f32.mrb[0].mxu0
        %2837 = vdwg.mxu0
        %v2838 = vmax.f32 %v2833, 0.0
        %v2839 = vpack.c.bf16 %v2838, %v2838
        %v2840 = vld [vmem:[%s10] sm:$0xf]
        %v2841 = vld [vmem:[%s10 + $0x4] sm:$0xf]
        %v2842 = vld [vmem:[%s10 + $0x8] sm:$0xf]
        %v2843 = vld [vmem:[%s10 + $0xc] sm:$0xf]
        %v2844 = vld [vmem:[%s11] sm:$0x1]
        %v2846 = vlaneseq
        %v2847 = vshrl.u32 %v2846, 7
        %v2848 = vsub.s32 0, %v2847
        %v2849 = vrot.slane %v2844, %v2848
        %v2855 = vunpack.c.l.b16 %v2840
        %v2856 = vunpack.c.l.b16 %v2841
        %v2857 = vunpack.c.l.b16 %v2842
        %v2858 = vunpack.c.l.b16 %v2843
        %v2859 = vpack.c.b16 %v2856, %v2855
        %v2860 = vpack.c.b16 %v2858, %v2857
        %v2864 = vsel %vm2472, %v2839, 0
        %2866 = vmatprep.subr.bf16.mxu0 0
        %2867 = vmatpush1.bf16.msra.mxu0 %v2859
        %2868 = vmatprep.subr.bf16.mxu0 0
        %2869 = vmatpush1.bf16.msra.mxu0 %v2860
        %2870 = vmatprep.subr.bf16.mxu0 0
        %2871 = vmatpush1.bf16.msra.mxu0 0
        %2872 = vmatprep.subr.bf16.mxu0 0
        %2873 = vmatpush1.bf16.msra.mxu0 0
        %2874 = vmatprep.subr.bf16.mxu0 0
        %2875 = vmatpush1.bf16.msra.mxu0 0
        %2876 = vmatprep.subr.bf16.mxu0 0
        %2877 = vmatpush1.bf16.msra.mxu0 0
        %2878 = vmatprep.subr.bf16.mxu0 0
        %2879 = vmatpush1.bf16.msra.mxu0 0
        %2880 = vmatprep.subr.bf16.mxu0 0
        %2881 = vmatpush1.bf16.msra.mxu0 0
        %2882 = vmatprep.subr.bf16.mxu0 0
        %2883 = vmatpush1.bf16.msra.mxu0 0
        %2884 = vmatprep.subr.bf16.mxu0 0
        %2885 = vmatpush1.bf16.msra.mxu0 0
        %2886 = vmatprep.subr.bf16.mxu0 0
        %2887 = vmatpush1.bf16.msra.mxu0 0
        %2888 = vmatprep.subr.bf16.mxu0 0
        %2889 = vmatpush1.bf16.msra.mxu0 0
        %2890 = vmatprep.subr.bf16.mxu0 0
        %2891 = vmatpush1.bf16.msra.mxu0 0
        %2892 = vmatprep.subr.bf16.mxu0 0
        %2893 = vmatpush1.bf16.msra.mxu0 0
        %2894 = vmatprep.subr.bf16.mxu0 0
        %2895 = vmatpush1.bf16.msra.mxu0 0
        %2896 = vmatprep.subr.bf16.mxu0 0
        %2897 = vmatpush1.bf16.msra.mxu0 0
        %2898 = vmatprep.mubr.bf16.mxu0 0
        %2899 = vmatmul.mubr.bf16.gmra.mrb[0].mxu0 %v2864
        %v2900 = vpop.f32.mrb[0].mxu0
        %v2901 = vadd.f32 %v2849, %v2900
        %v2902 = vpop.f32.mrb[0].mxu0
        %v2903 = vpop.f32.mrb[0].mxu0
        %v2904 = vpop.f32.mrb[0].mxu0
        %2905 = vdwg.mxu0
        %2906 = vst.msk [vmem:[%s407] sm:$0xff] %vm2472, %v2901
        %s2907 = sand.u32 %s291, 1
        %s2908 = scalar_lea.sflag [#allocation3], %s2907
        %s2909 = sand.u32 %s291, 1
        %s2910 = smul.addr %s2909, 8
        %s2911 = scalar_lea.vmem [#allocation2], %s2910
        // Predicated region
        $region69: #{tpu_custom_call.1} parent=67 // pred_check
          %p2912 = pneg %p301
        $region70: #{tpu_custom_call.1} parent=67 // pred_check_branch
          %2914 = sbr.rel (%p2912) target = $region72
        $region71: #{tpu_custom_call.1} parent=67 // pred_region
          %s2916 = ssub.s32 128, 128
          %2917 = vsyncadd %s2908, %s2916
          %s2918 = smul.addr %s26, 128
          %s2919 = scalar_lea.hbm %s12, %s2918
          %s2921 = sshll.u32 %s2911, 4
          %s2922 = int_to_ptr.vmem [resolvable:$true] %s2921
          %2924 = dma.vmem_to_hbm [thread:$0]  %s2922, 128, %s2919, %s2908
        $region72: #{tpu_custom_call.1} parent=67 // pred_fallthru
          _
      $region68: #{tpu_custom_call.1} parent=5 // pred_fallthru
        _
      %p2925 = scmp.le.s32.totalorder 2, %s21
      // Predicated region
      $region73: #{tpu_custom_call.1} parent=5 // pred_check
        %p2926 = pneg %p2925
      $region74: #{tpu_custom_call.1} parent=5 // pred_check_branch
        %2928 = sbr.rel (%p2926) target = $region76
      $region75: #{tpu_custom_call.1} parent=5 // pred_region
        %s2929 = ssub.s32 %s21, 2
        // Predicated region
        $region77: #{tpu_custom_call.1} parent=75 // pred_check
          %p2930 = pneg %p307
        $region78: #{tpu_custom_call.1} parent=75 // pred_check_branch
          %2932 = sbr.rel (%p2930) target = $region80
        $region79: #{tpu_custom_call.1} parent=75 // pred_region
          %s2933 = sand.u32 %s292, 1
          %s2934 = scalar_lea.sflag [#allocation3], %s2933
          %s2935 = sand.u32 %s292, 1
          %s2936 = smul.addr %s2935, 8
          %s2937 = scalar_lea.vmem [#allocation2], %s2936
          %2938 = dma.done %s2934, 128
        $region80: #{tpu_custom_call.1} parent=75 // pred_fallthru
          _
      $region76: #{tpu_custom_call.1} parent=5 // pred_fallthru
        _
    $region6: #{tpu_custom_call.1} parent=1 // loop_footer
      %s25 = sadd.s32 1, %s21
    $region7: #{tpu_custom_call.1} parent=1 // loop_footer_branch
      %20 = sbr.rel target = $region3
    $region8: #{tpu_custom_call.1} parent=1 // loop_exit
      _
    %2939 = vsyncpa [#allocation3], 1
    %s2940 = scalar_lea.sflag [#allocation3], 1
    %2941 = vsyncpa %s2940, 1

</llo_original>
